<compile_context>
chip_gen: v5e
topology: v5e:2x2
jax: 0.10.0
libtpu: 0.0.40
codegen_flags: <defaults>
</compile_context>

<pallas_src>
import jax
import jax.numpy as jnp
from jax import lax
from jax.experimental import pallas as pl
from jax.experimental.pallas import tpu as pltpu

D_PAD = 128      # padded node / embedding feature width (lane-dense)
TM = 128         # destination-node row tile (128-aligned: safe on v5e/v6e/v7x)
LN_EPS = 1e-5


def gin_fused_kernel(out_dims_ref,            # SMEM (L,) int32 (scalar prefetch)
                     a_ref,                   # (TM, N_pad)       int8 dst-row slab of A
                     h0_hbm,                  # (N_pad, D_PAD)    bf16, HBM (pl.ANY)
                     eb_ref,                  # (1, TM, D_PAD)    f32  agg_e @ W_e + b
                     wh_ref,                  # (1, D_PAD, D_PAD) bf16
                     gamma_ref, beta_ref,     # (1, 1, D_PAD)     f32
                     out_ref,                 # (TM, D_PAD)       f32  (final layer only)
                     h_buf,                   # scratch (2*N_pad, D_PAD) bf16 ping-pong
                     dma_sem):                # scratch DMA semaphore
    l = pl.program_id(0)                      # layer        (sequential)
    i = pl.program_id(1)                      # dst row tile (sequential: feeds l+1)
    n_layers = pl.num_programs(0)
    n_pad = h_buf.shape[0] // 2

    # One-shot DMA of the padded bf16 input node features into ping-pong slot 0
    # (h0 is NOT auto-pipelined, so it costs no double-buffered VMEM).
    @pl.when((l == 0) & (i == 0))
    def _():
        cp = pltpu.make_async_copy(h0_hbm, h_buf.at[pl.ds(0, n_pad), :], dma_sem)
        cp.start()
        cp.wait()

    cur = l % 2                                          # slot holding layer l's input
    src_start = pl.multiple_of(cur * n_pad, TM)
    h_cur = h_buf[pl.ds(src_start, n_pad), :]            # (N_pad, D_PAD) bf16

    # agg_h for this dst-row tile: one full-K MXU contraction (K axis collapsed).
    agg_h = jnp.dot(a_ref[...].astype(jnp.bfloat16), h_cur,
                    preferred_element_type=jnp.float32)  # (TM, D_PAD) f32

    # GINConv MLP on concat([agg_e, agg_h]) expressed in split form; the edge
    # half (agg_e @ W_e + b) is layer-invariant data x per-layer weight and was
    # precomputed in f32 in the JAX glue (eb_ref).  Then ReLU.
    z = jnp.dot(agg_h.astype(jnp.bfloat16), wh_ref[0],
                preferred_element_type=jnp.float32) + eb_ref[0]
    mlp = jnp.maximum(z, 0.0)

    # LayerNorm over this layer's true feature width (lanes beyond it are zero
    # padding).  eps=1e-5, biased variance — torch defaults.  (1, D_PAD) mask
    # keeps finalize vreg pressure low.
    d_out = out_dims_ref[l]
    lane = lax.broadcasted_iota(jnp.int32, (1, D_PAD), 1)
    mask = lane < d_out
    cnt = d_out.astype(jnp.float32)
    mean = jnp.sum(jnp.where(mask, mlp, 0.0), axis=-1, keepdims=True) / cnt
    diff = jnp.where(mask, mlp - mean, 0.0)
    var = jnp.sum(diff * diff, axis=-1, keepdims=True) / cnt
    ln = diff * lax.rsqrt(var + LN_EPS) * gamma_ref[0] + beta_ref[0]
    act = jnp.maximum(ln, 0.0)               # final per-layer activation (ReLU)

    # Stash as next layer's input (padded lanes stay exactly zero because
    # gamma/beta are zero-padded).  dropout(p=0, eval) between layers == identity.
    nxt = (l + 1) % 2
    dst_start = pl.multiple_of(nxt * n_pad + i * TM, TM)
    h_buf[pl.ds(dst_start, TM), :] = act.astype(jnp.bfloat16)

    # Only the final layer's activations leave the chip.  (Writebacks of this
    # output block at earlier layers carry stale buffer contents and are fully
    # overwritten by the l == L-1 step, which is the last writer — benign.)
    @pl.when(l == n_layers - 1)
    def _():
        out_ref[...] = act


def gin_forward_fused(out_dims, A_i8, h0, eb, Wh, gamma, beta):
    """All GIN layers in one pallas_call. Returns the final layer's (N_pad, D_PAD)
    post-activation node features in f32."""
    L = Wh.shape[0]
    n_pad = A_i8.shape[0]
    assert n_pad % TM == 0

    flops = 2 * L * n_pad * (n_pad + D_PAD) * D_PAD
    bytes_accessed = (L * A_i8.size + 2 * h0.size + 4 * eb.size + 2 * Wh.size
                      + 4 * (gamma.size + beta.size) + 4 * n_pad * D_PAD)

    # Re-derive the scoped-VMEM budget from the actual buffers (valid on the
    # 64 MiB-physical v7x as well as 128 MiB v5e/v6e).
    block_bytes = (TM * n_pad                 # A int8 row slab
                   + TM * D_PAD * 4           # eb f32
                   + D_PAD * D_PAD * 2        # Wh bf16
                   + 2 * D_PAD * 4            # gamma + beta
                   + TM * D_PAD * 4)          # out f32
    vmem_bytes = 2 * block_bytes + 2 * n_pad * D_PAD * 2   # dbl-buffers + h ping-pong
    vmem_limit = int(min(max(4 * vmem_bytes, 8 * 1024 * 1024), 64 * 1024 * 1024))

    return pl.pallas_call(
        gin_fused_kernel,
        out_shape=jax.ShapeDtypeStruct((n_pad, D_PAD), jnp.float32),
        grid_spec=pltpu.PrefetchScalarGridSpec(
            num_scalar_prefetch=1,
            grid=(L, n_pad // TM),
            in_specs=[
                pl.BlockSpec((TM, n_pad), lambda l, i, d: (i, 0)),            # A row slab
                pl.BlockSpec(memory_space=pl.ANY),                            # h0 (HBM)
                pl.BlockSpec((1, TM, D_PAD), lambda l, i, d: (l, i, 0)),      # agg_e@W_e + b
                pl.BlockSpec((1, D_PAD, D_PAD), lambda l, i, d: (l, 0, 0)),   # W_h
                pl.BlockSpec((1, 1, D_PAD), lambda l, i, d: (l, 0, 0)),       # gamma
                pl.BlockSpec((1, 1, D_PAD), lambda l, i, d: (l, 0, 0)),       # beta
            ],
            out_specs=pl.BlockSpec((TM, D_PAD), lambda l, i, d: (i, 0)),
            scratch_shapes=[
                pltpu.VMEM((2 * n_pad, D_PAD), jnp.bfloat16),   # h ping-pong buffer
                pltpu.SemaphoreType.DMA(()),                    # h0 staging DMA sem
            ],
        ),
        compiler_params=pltpu.CompilerParams(
            # Both axes must be sequential: layers depend on each other through
            # the VMEM-resident h buffer, and every row tile of layer l+1 reads
            # all row tiles produced by layer l.
            dimension_semantics=("arbitrary", "arbitrary"),
            vmem_limit_bytes=vmem_limit,
        ),
        cost_estimate=pl.CostEstimate(flops=flops,
                                      transcendentals=L * n_pad,
                                      bytes_accessed=bytes_accessed),
    )(out_dims, A_i8, h0, eb, Wh, gamma, beta)


def build_graph_operators(src, dst, num_nodes, edge_attr, edge_dim, n_pad):
    """Plain-JAX graph plumbing: self loops, dense incoming adjacency (the
    in-kernel scatter operator, stored int8) and the layer-invariant edge
    aggregation agg_e = segment_sum(e_full, dst), hoisted out of the per-layer
    hot path."""
    n = num_nodes
    self_idx = jnp.arange(n, dtype=src.dtype)
    src_full = jnp.concatenate([src, self_idx], axis=0)
    dst_full = jnp.concatenate([dst, self_idx], axis=0)

    # self_loop_attr: zeros(edge_dim) with last entry = 1, one per node.
    self_loop_attr = jnp.zeros((1, edge_dim), jnp.float32).at[:, -1].set(1.0)
    e_full = jnp.concatenate(
        [edge_attr.astype(jnp.float32), jnp.tile(self_loop_attr, (n, 1))], axis=0)

    # Dense incoming adjacency with multi-edge counts + self loops.
    counts = jnp.zeros((n_pad, n_pad), jnp.float32).at[dst_full, src_full].add(1.0)
    A_i8 = counts.astype(jnp.int8)            # exact only for counts <= 127 (asserted)

    # Layer-invariant edge aggregation, computed once and reused by every layer.
    agg_e = jnp.zeros((n_pad, edge_dim), jnp.float32).at[dst_full].add(e_full)
    return A_i8, counts, agg_e


def init_gin_params(key, in_feats, edge_dim, n_hidden, n_classes, n_layers):
    """Deterministic synthetic parameters (padded + stacked per layer)."""
    dims = [in_feats] + [n_hidden] * (n_layers - 1) + [n_classes]
    Wh = jnp.zeros((n_layers, D_PAD, D_PAD), jnp.float32)
    gamma = jnp.zeros((n_layers, 1, D_PAD), jnp.float32)   # zero in padded lanes!
    beta = jnp.zeros((n_layers, 1, D_PAD), jnp.float32)
    raw = []                                                # unpadded, for f32 ref
    for li in range(n_layers):
        d_in, d_out = dims[li], dims[li + 1]
        fan_in = d_in + edge_dim
        key, kw, kb = jax.random.split(key, 3)
        W = jax.random.normal(kw, (fan_in, d_out), jnp.float32) / jnp.sqrt(float(fan_in))
        bb = jax.random.normal(kb, (1, d_out), jnp.float32) * 0.01
        # message layout is [edge_feat, node_feat] -> node half goes to Wh.
        Wh = Wh.at[li, :d_in, :d_out].set(W[edge_dim:])
        gamma = gamma.at[li, :, :d_out].set(1.0)            # LayerNorm defaults
        raw.append(dict(W=W, b=bb))
    out_dims = jnp.array(dims[1:], jnp.int32)
    params = dict(Wh=Wh.astype(jnp.bfloat16), gamma=gamma, beta=beta,
                  out_dims=out_dims)
    return params, raw


def build_edge_bias(raw_params, agg_e, edge_dim, n_pad, n_layers):
    """Precompute the layer-invariant-data x per-layer-weight term
    eb[l] = agg_e @ W_e[l] + b[l] in f32 (padded to D_PAD lanes)."""
    eb = jnp.zeros((n_layers, n_pad, D_PAD), jnp.float32)
    for li, p in enumerate(raw_params):
        d_out = p["W"].shape[1]
        eb = eb.at[li, :, :d_out].set(agg_e @ p["W"][:edge_dim] + p["b"])
    return eb


def gin_reference(raw_params, src, dst, h0, edge_attr, num_nodes, edge_dim):
    """Pure-JAX f32 reference of the torch module (norm='layer', prelu=False,
    dropout in eval / p=0)."""
    n = num_nodes
    self_idx = jnp.arange(n, dtype=src.dtype)
    src_full = jnp.concatenate([src, self_idx], axis=0)
    dst_full = jnp.concatenate([dst, self_idx], axis=0)
    self_loop_attr = jnp.zeros((1, edge_dim), jnp.float32).at[:, -1].set(1.0)
    e_full = jnp.concatenate(
        [edge_attr.astype(jnp.float32), jnp.tile(self_loop_attr, (n, 1))], axis=0)
    h = h0
    for p in raw_params:
        msg = jnp.concatenate([e_full, h[src_full]], axis=1)
        h_neigh = jnp.zeros((n, msg.shape[1]), jnp.float32).at[dst_full].add(msg)
        z = jnp.maximum(h_neigh @ p["W"] + p["b"], 0.0)
        mean = jnp.mean(z, axis=-1, keepdims=True)
        var = jnp.mean((z - mean) ** 2, axis=-1, keepdims=True)
        ln = (z - mean) * lax.rsqrt(var + LN_EPS)            # gamma=1, beta=0
        h = jnp.maximum(ln, 0.0)
    return h


if __name__ == "__main__":
    # Small synthetic graph (big enough to exercise >1 dst-row tile).
    N = 200            # nodes
    E = 600            # directed edges (before self loops)
    in_feats = 16
    edge_dim = 8
    n_hidden = 32
    n_classes = 8
    n_layers = 3       # norm='layer', prelu=False, dropout=0.0 (eval)

    n_pad = ((N + TM - 1) // TM) * TM            # 256

    key = jax.random.PRNGKey(0)
    k_src, k_dst, k_h, k_e, k_p = jax.random.split(key, 5)
    src = jax.random.randint(k_src, (E,), 0, N, dtype=jnp.int32)
    dst = jax.random.randint(k_dst, (E,), 0, N, dtype=jnp.int32)
    h0 = jax.random.normal(k_h, (N, in_feats), jnp.float32)
    edge_attr = jax.random.normal(k_e, (E, edge_dim), jnp.float32)

    A_i8, counts, agg_e = build_graph_operators(src, dst, N, edge_attr, edge_dim, n_pad)
    assert float(jnp.max(counts)) <= 127.0, "int8 adjacency requires edge counts <= 127"

    params, raw_params = init_gin_params(k_p, in_feats, edge_dim, n_hidden,
                                         n_classes, n_layers)
    eb = build_edge_bias(raw_params, agg_e, edge_dim, n_pad, n_layers)

    h0_pad = jnp.zeros((n_pad, D_PAD), jnp.float32).at[:N, :in_feats].set(h0)
    h0_pad = h0_pad.astype(jnp.bfloat16)

    out_full = gin_forward_fused(params["out_dims"], A_i8, h0_pad, eb,
                                 params["Wh"], params["gamma"], params["beta"])
    out_full = jax.block_until_ready(out_full)

    assert out_full.shape == (n_pad, D_PAD) and out_full.dtype == jnp.float32
    out = out_full[:N, :n_classes]

    # Loose check vs. an f32 reference (kernel deliberately uses bf16/int8
    # operands with f32 MXU accumulation).
    ref = gin_reference(raw_params, src, dst, h0, edge_attr, N, edge_dim)
    mae = float(jnp.mean(jnp.abs(out - ref)))
    assert mae < 5e-2, f"mean abs error too large: {mae}"
    print("KERNEL_OK")
</pallas_src>

<mosaic_0001>
module attributes {stable_mosaic.version = 11 : i64} {
  func.func @gin_fused_kernel(%arg0: i32, %arg1: i32, %arg2: memref<3xi32, #tpu.memory_space<smem>>, %arg3: memref<128x256xi8, #tpu.memory_space<vmem>>, %arg4: memref<256x128xbf16, #tpu.memory_space<any>>, %arg5: memref<1x128x128xf32, #tpu.memory_space<vmem>>, %arg6: memref<1x128x128xbf16, #tpu.memory_space<vmem>>, %arg7: memref<1x1x128xf32, #tpu.memory_space<vmem>>, %arg8: memref<1x1x128xf32, #tpu.memory_space<vmem>>, %arg9: memref<128x128xf32, #tpu.memory_space<vmem>>, %arg10: memref<512x128xbf16, #tpu.memory_space<vmem>>, %arg11: memref<!tpu.dma_semaphore, #tpu.memory_space<semaphore_mem>>) attributes {dimension_semantics = [#tpu.dimension_semantics<arbitrary>, #tpu.dimension_semantics<arbitrary>], iteration_bounds = array<i64: 3, 2>, scalar_prefetch = 1 : i64, scratch_operands = 2 : i64, tpu.core_type = #tpu.core_type<tc>, window_params = [{transform_indices = @transform_0, window_bounds = array<i64: 128, 256>}, {}, {transform_indices = @transform_2, window_bounds = array<i64: 1, 128, 128>}, {transform_indices = @transform_3, window_bounds = array<i64: 1, 128, 128>}, {transform_indices = @transform_4, window_bounds = array<i64: 1, 1, 128>}, {transform_indices = @transform_5, window_bounds = array<i64: 1, 1, 128>}, {transform_indices = @transform_6, window_bounds = array<i64: 128, 128>}]} {
    %c0_i32 = arith.constant 0 : i32
    %0 = arith.cmpi eq, %arg0, %c0_i32 : i32
    %c0_i32_0 = arith.constant 0 : i32
    %1 = arith.cmpi eq, %arg1, %c0_i32_0 : i32
    %2 = arith.andi %0, %1 : i1
    %3 = arith.extui %2 : i1 to i32
    %c0_i32_1 = arith.constant 0 : i32
    %4 = arith.cmpi ne, %3, %c0_i32_1 : i32
    scf.if %4 {
      %c0_i32_39 = arith.constant 0 : i32
      %c0_i32_40 = arith.constant 0 : i32
      %92 = tpu.memref_slice %arg10[%c0_i32_39, %c0_i32_40] : memref<512x128xbf16, #tpu.memory_space<vmem>> -> memref<256x128xbf16, #tpu.memory_space<vmem>>
      tpu.enqueue_dma source(%arg4 : memref<256x128xbf16, #tpu.memory_space<any>>) target(%92 : memref<256x128xbf16, #tpu.memory_space<vmem>>) target_semaphore(%arg11 : memref<!tpu.dma_semaphore, #tpu.memory_space<semaphore_mem>>)
      %c0_i32_41 = arith.constant 0 : i32
      %c0_i32_42 = arith.constant 0 : i32
      %93 = tpu.memref_slice %arg10[%c0_i32_41, %c0_i32_42] : memref<512x128xbf16, #tpu.memory_space<vmem>> -> memref<256x128xbf16, #tpu.memory_space<vmem>>
      tpu.wait_dma2 semaphore(%arg11 : memref<!tpu.dma_semaphore, #tpu.memory_space<semaphore_mem>>) src(%arg4 : memref<256x128xbf16, #tpu.memory_space<any>>) dst(%93 : memref<256x128xbf16, #tpu.memory_space<vmem>>)
    } else {
    }
    %c2_i32 = arith.constant 2 : i32
    %c0_i32_2 = arith.constant 0 : i32
    %5 = arith.cmpi eq, %c2_i32, %c0_i32_2 : i32
    %c1_i32 = arith.constant 1 : i32
    %6 = arith.select %5, %c1_i32, %c2_i32 : i32
    %7 = arith.remsi %arg0, %6 : i32
    %c0_i32_3 = arith.constant 0 : i32
    %8 = arith.cmpi ne, %7, %c0_i32_3 : i32
    %c0_i32_4 = arith.constant 0 : i32
    %9 = arith.cmpi slt, %7, %c0_i32_4 : i32
    %c0_i32_5 = arith.constant 0 : i32
    %10 = arith.cmpi slt, %6, %c0_i32_5 : i32
    %11 = arith.xori %9, %10 : i1
    %12 = arith.andi %11, %8 : i1
    %13 = arith.addi %7, %6 : i32
    %14 = arith.select %12, %13, %7 : i32
    %c256_i32 = arith.constant 256 : i32
    %15 = arith.muli %14, %c256_i32 : i32
    %16 = tpu.assume_multiple %15, 128 : i32
    %17 = arith.index_cast %16 : i32 to index
    %c0 = arith.constant 0 : index
    %18 = vector.load %arg10[%17, %c0] : memref<512x128xbf16, #tpu.memory_space<vmem>>, vector<256x128xbf16>
    %c0_6 = arith.constant 0 : index
    %c0_7 = arith.constant 0 : index
    %19 = vector.load %arg3[%c0_6, %c0_7] : memref<128x256xi8, #tpu.memory_space<vmem>>, vector<128x256xi8>
    %20 = arith.sitofp %19 : vector<128x256xi8> to vector<128x256xbf16>
    %cst = arith.constant dense<0.000000e+00> : vector<128x128xf32>
    %21 = tpu.matmul %20, %18, %cst {dimension_numbers = #tpu.dot_dimension_numbers<[1], [0], [0], [1], [0, 0, 1, 1], [], []>} : vector<128x256xbf16>, vector<256x128xbf16>, vector<128x128xf32> -> vector<128x128xf32>
    %22 = arith.truncf %21 : vector<128x128xf32> to vector<128x128xbf16>
    %c0_8 = arith.constant 0 : index
    %c0_9 = arith.constant 0 : index
    %c0_10 = arith.constant 0 : index
    %23 = vector.load %arg6[%c0_8, %c0_9, %c0_10] : memref<1x128x128xbf16, #tpu.memory_space<vmem>>, vector<1x128x128xbf16>
    %24 = vector.shape_cast %23 : vector<1x128x128xbf16> to vector<128x128xbf16>
    %cst_11 = arith.constant dense<0.000000e+00> : vector<128x128xf32>
    %25 = tpu.matmul %22, %24, %cst_11 {dimension_numbers = #tpu.dot_dimension_numbers<[1], [0], [0], [1], [0, 0, 1, 1], [], []>} : vector<128x128xbf16>, vector<128x128xbf16>, vector<128x128xf32> -> vector<128x128xf32>
    %c0_12 = arith.constant 0 : index
    %c0_13 = arith.constant 0 : index
    %c0_14 = arith.constant 0 : index
    %26 = vector.load %arg5[%c0_12, %c0_13, %c0_14] : memref<1x128x128xf32, #tpu.memory_space<vmem>>, vector<1x128x128xf32>
    %27 = vector.shape_cast %26 : vector<1x128x128xf32> to vector<128x128xf32>
    %28 = arith.addf %25, %27 : vector<128x128xf32>
    %cst_15 = arith.constant 0.000000e+00 : f32
    %29 = vector.broadcast %cst_15 : f32 to vector<128x128xf32>
    %30 = arith.maximumf %28, %29 : vector<128x128xf32>
    %31 = arith.index_cast %arg0 : i32 to index
    %32 = memref.load %arg2[%31] : memref<3xi32, #tpu.memory_space<smem>>
    %33 = tpu.iota {dimensions = array<i32: 1>} : vector<1x128xi32>
    %34 = vector.broadcast %32 : i32 to vector<1x128xi32>
    %35 = arith.cmpi slt, %33, %34 : vector<1x128xi32>
    %36 = arith.sitofp %32 : i32 to f32
    %cst_16 = arith.constant 0.000000e+00 : f32
    %37 = vector.shape_cast %35 : vector<1x128xi1> to vector<1x128xi1>
    %38 = vector.broadcast %37 : vector<1x128xi1> to vector<128x128xi1>
    %39 = vector.broadcast %cst_16 : f32 to vector<128x128xf32>
    %40 = arith.select %38, %30, %39 : vector<128x128xi1>, vector<128x128xf32>
    %cst_17 = arith.constant dense<0.000000e+00> : vector<128xf32>
    %41 = vector.multi_reduction <add>, %40, %cst_17 [1] : vector<128x128xf32> to vector<128xf32>
    %42 = vector.shape_cast %41 : vector<128xf32> to vector<128x1xf32>
    %43 = vector.broadcast %36 : f32 to vector<128x1xf32>
    %44 = arith.divf %42, %43 : vector<128x1xf32>
    %45 = vector.broadcast %44 : vector<128x1xf32> to vector<128x128xf32>
    %46 = arith.subf %30, %45 : vector<128x128xf32>
    %cst_18 = arith.constant 0.000000e+00 : f32
    %47 = vector.shape_cast %35 : vector<1x128xi1> to vector<1x128xi1>
    %48 = vector.broadcast %47 : vector<1x128xi1> to vector<128x128xi1>
    %49 = vector.broadcast %cst_18 : f32 to vector<128x128xf32>
    %50 = arith.select %48, %46, %49 : vector<128x128xi1>, vector<128x128xf32>
    %51 = arith.mulf %50, %50 : vector<128x128xf32>
    %cst_19 = arith.constant dense<0.000000e+00> : vector<128xf32>
    %52 = vector.multi_reduction <add>, %51, %cst_19 [1] : vector<128x128xf32> to vector<128xf32>
    %53 = vector.shape_cast %52 : vector<128xf32> to vector<128x1xf32>
    %54 = vector.broadcast %36 : f32 to vector<128x1xf32>
    %55 = arith.divf %53, %54 : vector<128x1xf32>
    %cst_20 = arith.constant 9.99999974E-6 : f32
    %56 = vector.broadcast %cst_20 : f32 to vector<128x1xf32>
    %57 = arith.addf %55, %56 : vector<128x1xf32>
    %58 = math.rsqrt %57 : vector<128x1xf32>
    %59 = vector.broadcast %58 : vector<128x1xf32> to vector<128x128xf32>
    %60 = arith.mulf %50, %59 : vector<128x128xf32>
    %c0_21 = arith.constant 0 : index
    %c0_22 = arith.constant 0 : index
    %c0_23 = arith.constant 0 : index
    %61 = vector.load %arg7[%c0_21, %c0_22, %c0_23] : memref<1x1x128xf32, #tpu.memory_space<vmem>>, vector<1x1x128xf32>
    %62 = vector.shape_cast %61 : vector<1x1x128xf32> to vector<1x128xf32>
    %63 = vector.broadcast %62 : vector<1x128xf32> to vector<128x128xf32>
    %64 = arith.mulf %60, %63 : vector<128x128xf32>
    %c0_24 = arith.constant 0 : index
    %c0_25 = arith.constant 0 : index
    %c0_26 = arith.constant 0 : index
    %65 = vector.load %arg8[%c0_24, %c0_25, %c0_26] : memref<1x1x128xf32, #tpu.memory_space<vmem>>, vector<1x1x128xf32>
    %66 = vector.shape_cast %65 : vector<1x1x128xf32> to vector<1x128xf32>
    %67 = vector.broadcast %66 : vector<1x128xf32> to vector<128x128xf32>
    %68 = arith.addf %64, %67 : vector<128x128xf32>
    %cst_27 = arith.constant 0.000000e+00 : f32
    %69 = vector.broadcast %cst_27 : f32 to vector<128x128xf32>
    %70 = arith.maximumf %68, %69 : vector<128x128xf32>
    %c1_i32_28 = arith.constant 1 : i32
    %71 = arith.addi %arg0, %c1_i32_28 : i32
    %c2_i32_29 = arith.constant 2 : i32
    %c0_i32_30 = arith.constant 0 : i32
    %72 = arith.cmpi eq, %c2_i32_29, %c0_i32_30 : i32
    %c1_i32_31 = arith.constant 1 : i32
    %73 = arith.select %72, %c1_i32_31, %c2_i32_29 : i32
    %74 = arith.remsi %71, %73 : i32
    %c0_i32_32 = arith.constant 0 : i32
    %75 = arith.cmpi ne, %74, %c0_i32_32 : i32
    %c0_i32_33 = arith.constant 0 : i32
    %76 = arith.cmpi slt, %74, %c0_i32_33 : i32
    %c0_i32_34 = arith.constant 0 : i32
    %77 = arith.cmpi slt, %73, %c0_i32_34 : i32
    %78 = arith.xori %76, %77 : i1
    %79 = arith.andi %78, %75 : i1
    %80 = arith.addi %74, %73 : i32
    %81 = arith.select %79, %80, %74 : i32
    %c256_i32_35 = arith.constant 256 : i32
    %82 = arith.muli %81, %c256_i32_35 : i32
    %c128_i32 = arith.constant 128 : i32
    %83 = arith.muli %arg1, %c128_i32 : i32
    %84 = arith.addi %82, %83 : i32
    %85 = tpu.assume_multiple %84, 128 : i32
    %86 = arith.truncf %70 : vector<128x128xf32> to vector<128x128xbf16>
    %87 = arith.index_cast %85 : i32 to index
    %c0_36 = arith.constant 0 : index
    %88 = vector.load %arg10[%87, %c0_36] : memref<512x128xbf16, #tpu.memory_space<vmem>>, vector<128x128xbf16>
    tpu.vector_store %arg10[%87, %c0_36], %86 {strides = array<i32>} : memref<512x128xbf16, #tpu.memory_space<vmem>>, vector<128x128xbf16>,
    %c2_i32_37 = arith.constant 2 : i32
    %89 = arith.cmpi eq, %arg0, %c2_i32_37 : i32
    %90 = arith.extui %89 : i1 to i32
    %c0_i32_38 = arith.constant 0 : i32
    %91 = arith.cmpi ne, %90, %c0_i32_38 : i32
    scf.if %91 {
      %c0_39 = arith.constant 0 : index
      %c0_40 = arith.constant 0 : index
      %92 = vector.load %arg9[%c0_39, %c0_40] : memref<128x128xf32, #tpu.memory_space<vmem>>, vector<128x128xf32>
      tpu.vector_store %arg9[%c0_39, %c0_40], %70 {strides = array<i32>} : memref<128x128xf32, #tpu.memory_space<vmem>>, vector<128x128xf32>,
    } else {
    }
    return
  }
  func.func @transform_0(%arg0: i32, %arg1: i32, %arg2: memref<3xi32, #tpu.memory_space<smem>>) -> (i32, i32) {
    %c0_i32 = arith.constant 0 : i32
    %c0_i32_0 = arith.constant 0 : i32
    return %arg1, %c0_i32 : i32, i32
  }
  func.func @transform_2(%arg0: i32, %arg1: i32, %arg2: memref<3xi32, #tpu.memory_space<smem>>) -> (i32, i32, i32) {
    %c0_i32 = arith.constant 0 : i32
    %c0_i32_0 = arith.constant 0 : i32
    return %arg0, %arg1, %c0_i32 : i32, i32, i32
  }
  func.func @transform_3(%arg0: i32, %arg1: i32, %arg2: memref<3xi32, #tpu.memory_space<smem>>) -> (i32, i32, i32) {
    %c0_i32 = arith.constant 0 : i32
    %c0_i32_0 = arith.constant 0 : i32
    %c0_i32_1 = arith.constant 0 : i32
    return %arg0, %c0_i32, %c0_i32_0 : i32, i32, i32
  }
  func.func @transform_4(%arg0: i32, %arg1: i32, %arg2: memref<3xi32, #tpu.memory_space<smem>>) -> (i32, i32, i32) {
    %c0_i32 = arith.constant 0 : i32
    %c0_i32_0 = arith.constant 0 : i32
    %c0_i32_1 = arith.constant 0 : i32
    return %arg0, %c0_i32, %c0_i32_0 : i32, i32, i32
  }
  func.func @transform_5(%arg0: i32, %arg1: i32, %arg2: memref<3xi32, #tpu.memory_space<smem>>) -> (i32, i32, i32) {
    %c0_i32 = arith.constant 0 : i32
    %c0_i32_0 = arith.constant 0 : i32
    %c0_i32_1 = arith.constant 0 : i32
    return %arg0, %c0_i32, %c0_i32_0 : i32, i32, i32
  }
  func.func @transform_6(%arg0: i32, %arg1: i32, %arg2: memref<3xi32, #tpu.memory_space<smem>>) -> (i32, i32) {
    %c0_i32 = arith.constant 0 : i32
    %c0_i32_0 = arith.constant 0 : i32
    return %arg1, %c0_i32 : i32, i32
  }
}

</mosaic_0001>

<llo_original>
// kernel: tpu_custom_call.1
$region0: #{tpu_custom_call.1}
  #allocation0 [shape = 'u32[]', space=smem, size = 0x4, offset = 0x4, fixed_abs, tag = 'smem constant byte address 0x4 - core index']
  #allocation1 [shape = 'u32[72,128]{1,0:T(1,128)}', space=vmem, size = 0x9000, scoped, tag = 'internal scratch']
  #allocation2 [shape = 'bf16[512,128]{1,0:T(8,128)(2,1)}', space=vmem, size = 0x20000, scoped, tag = 'scratch operand']
  #allocation3 [shape = 's32[1]{0}', space=sflag, size = 0x4, scoped, tag = 'scratch operand']
  #allocation4 [shape = 's32[1]{0}', space=sflag, size = 0x4, scoped, tag = 'scoped memory for tpu_custom_call.1']
  #allocation5 [shape = 'u8[512]{0}', space=smem, size = 0x200, scoped, tag = 'prefetched SMEM operand 0']
  #allocation15 [shape = 's32[]', space=sflag, size = 0x4, offset = 0, fixed_abs, tag = 'sflag constant byte address 0x0 - dummy sync flag']
  #allocation16 [shape = 's32[]', space=sflag, size = 0x4, offset = 0, fixed_abs, tag = 'sflag constant byte address 0x0 - dummy sync flag']
  #allocation17 [shape = 'u32[]', space=smem, size = 0x4, offset = 0x44, fixed_abs, tag = 'smem constant byte address 0x44 - assertion arg 0']
  #allocation18 [shape = 'u32[]', space=smem, size = 0x4, offset = 0x48, fixed_abs, tag = 'smem constant byte address 0x48 - assertion arg 1']
  %s0 = inlined_call_operand.hbm [shape: s32[3], index: 0, kind: input, shape index: {}]
  %s1 = inlined_call_operand.hbm [shape: s8[256,256], index: 1, kind: input, shape index: {}]
  %s2 = inlined_call_operand.hbm [shape: bf16[256,128], index: 2, kind: input, shape index: {}]
  %s3 = inlined_call_operand.hbm [shape: f32[3,256,128], index: 3, kind: input, shape index: {}]
  %s4 = inlined_call_operand.hbm [shape: bf16[3,128,128], index: 4, kind: input, shape index: {}]
  %s5 = inlined_call_operand.vmem [shape: f32[3,1,128], index: 5, kind: input, shape index: {}]
  %s6 = inlined_call_operand.hbm [shape: f32[3,1,128], index: 6, kind: input, shape index: {}]
  %s7 = inlined_call_operand.hbm [shape: f32[256,128], index: 7, kind: output, shape index: {}]
  %s8 = sld [smem:[#allocation0]]
  $region81: #{tpu_custom_call.1} parent=0
    _
  %s10 = ssub.s32 1, %s8
  %s11 = scalar_select 0, %s10, %s8
  %s13 = sshll.u32 %s0, 4
  %s14 = int_to_ptr.hbm [resolvable:$true] %s13
  %16 = dma.hbm_to_smem %s14, 16, [#allocation5], [#allocation4]
  %18 = dma.done [#allocation4], 16
  %19 = sfence
  $region1: #{tpu_custom_call.1} parent=0
    #allocation6 [shape = 'u8[65536]{0}', space=vmem, size = 0x10000, scoped, tag = 'input window, operand 1']
    #allocation7 [shape = 's32[2]{0}', space=sflag, size = 0x8, scoped, tag = 'scoped memory for tpu_custom_call.1']
    #allocation8 [shape = 's32[2]{0}', space=sflag, size = 0x8, scoped, tag = 'scoped memory for tpu_custom_call.1']
    #allocation9 [shape = 'u8[131072]{0}', space=vmem, size = 0x20000, scoped, tag = 'input window, operand 3']
    #allocation10 [shape = 's32[2]{0}', space=sflag, size = 0x8, scoped, tag = 'scoped memory for tpu_custom_call.1']
    #allocation11 [shape = 'u8[65536]{0}', space=vmem, size = 0x10000, scoped, tag = 'input window, operand 4']
    #allocation12 [shape = 'u8[1024]{0}', space=vmem, size = 0x400, scoped, tag = 'input window, operand 6']
    #allocation13 [shape = 's32[2]{0}', space=sflag, size = 0x8, scoped, tag = 'scoped memory for tpu_custom_call.1']
    #allocation14 [shape = 'u8[131072]{0}', space=vmem, size = 0x20000, scoped, tag = 'output window, operand 0']
    %20 = vsyncpa [#allocation7], 0
    %s21 = scalar_lea.sflag [#allocation7], 1
    %22 = vsyncpa %s21, 0
    %23 = vsyncpa [#allocation10], 0
    %s24 = scalar_lea.sflag [#allocation10], 1
    %25 = vsyncpa %s24, 0
    %26 = vsyncpa [#allocation13], 0
    %s27 = scalar_lea.sflag [#allocation13], 1
    %28 = vsyncpa %s27, 0
    %29 = vsyncpa [#allocation8], 0
    %s30 = scalar_lea.sflag [#allocation8], 1
    %31 = vsyncpa %s30, 0
    loop: start=0, step=1, limit=8
    $region2: #{tpu_custom_call.1} parent=1 // loop_pre_header
      _
    $region3: #{tpu_custom_call.1} parent=1 // loop_header
      %s33 = sphi 0, %s37
      %p34 = scmp.ge.s32.totalorder %s33, 8
      %s40 = sphi 0, %s52
      %s41 = sphi 0, %s48
      %s42 = sphi 0, %s40
      %s43 = sphi 0, %s41
      %s44 = sphi 0, %s42
      %s45 = sphi 0, %s43
      %s55 = sphi 0, %s57
      %s58 = sphi 0, %s55
      %s59 = sphi 0, %s58
      %s75 = sphi 0, %s59
      %s83 = sphi 0, %s85
      %s86 = sphi 0, %s83
      %s87 = sphi 0, %s86
      %s103 = sphi 0, %s87
      %s109 = sphi 0, %s111
      %s112 = sphi 0, %s109
      %s113 = sphi 0, %s112
      %s129 = sphi 0, %s113
      %s135 = sphi 0, %s137
      %s138 = sphi 0, %s135
      %s139 = sphi 0, %s138
      %s155 = sphi 0, %s139
      %s161 = sphi 0, %s163
      %s164 = sphi 0, %s161
      %s165 = sphi 0, %s164
      %s181 = sphi 0, %s165
      %s187 = sphi 0, %s189
      %s190 = sphi 0, %s187
      %s191 = sphi 0, %s190
      %s207 = sphi 0, %s191
    $region4: #{tpu_custom_call.1} parent=1 // loop_header_branch
      %36 = sbr.rel (%p34) target = $region8
    $region5: #{tpu_custom_call.1} parent=1 // loop_body
      %s38 = ssub.s32 %s33, 1
      %s39 = ssub.s32 %s33, 2
      %s46 = sadd.s32 1, %s41
      %p47 = scmp.ge.s32.totalorder %s46, 2
      %s48 = scalar_select %p47, 0, %s46
      %s49 = sadd.s32 1, %s40
      %s50 = scalar_select %p47, %s49, %s40
      %p51 = scmp.ge.s32.totalorder %s50, 3
      %s52 = scalar_select %p51, 0, %s50
      %s53 = ssub.s32 %s41, %s48
      %p54 = scmp.eq.s32.totalorder %s53, 0
      %s56 = sadd.s32 %s55, 1
      %s57 = scalar_select %p54, %s55, %s56
      %p60 = pneg %p54
      %p61 = scmp.eq.s32.totalorder %s33, 5
      %p62 = por %p60, %p61
      %p63 = scmp.ne.s32.totalorder %s55, %s58
      %p64 = scmp.eq.s32.totalorder %s33, 0
      %p65 = por %p63, %p64
      %p66 = scmp.ne.s32.totalorder %s55, %s58
      %p67 = scmp.eq.s32.totalorder %s38, 5
      %p68 = por %p66, %p67
      %p69 = scmp.ne.s32.totalorder %s58, %s59
      %p70 = scmp.eq.s32.totalorder %s38, 0
      %p71 = por %p69, %p70
      %p72 = scmp.ne.s32.totalorder %s58, %s59
      %p73 = scmp.eq.s32.totalorder %s39, 5
      %p74 = por %p72, %p73
      %p76 = scmp.ne.s32.totalorder %s59, %s75
      %p77 = scmp.eq.s32.totalorder %s39, 0
      %p78 = por %p76, %p77
      %s79 = ssub.s32 %s40, %s52
      %s80 = ssub.s32 %s41, %s48
      %s81 = sor.u32 %s79, %s80
      %p82 = scmp.eq.s32.totalorder %s81, 0
      %s84 = sadd.s32 %s83, 1
      %s85 = scalar_select %p82, %s83, %s84
      %p88 = pneg %p82
      %p89 = scmp.eq.s32.totalorder %s33, 5
      %p90 = por %p88, %p89
      %p91 = scmp.ne.s32.totalorder %s83, %s86
      %p92 = scmp.eq.s32.totalorder %s33, 0
      %p93 = por %p91, %p92
      %p94 = scmp.ne.s32.totalorder %s83, %s86
      %p95 = scmp.eq.s32.totalorder %s38, 5
      %p96 = por %p94, %p95
      %p97 = scmp.ne.s32.totalorder %s86, %s87
      %p98 = scmp.eq.s32.totalorder %s38, 0
      %p99 = por %p97, %p98
      %p100 = scmp.ne.s32.totalorder %s86, %s87
      %p101 = scmp.eq.s32.totalorder %s39, 5
      %p102 = por %p100, %p101
      %p104 = scmp.ne.s32.totalorder %s87, %s103
      %p105 = scmp.eq.s32.totalorder %s39, 0
      %p106 = por %p104, %p105
      %s107 = ssub.s32 %s40, %s52
      %p108 = scmp.eq.s32.totalorder %s107, 0
      %s110 = sadd.s32 %s109, 1
      %s111 = scalar_select %p108, %s109, %s110
      %p114 = pneg %p108
      %p115 = scmp.eq.s32.totalorder %s33, 5
      %p116 = por %p114, %p115
      %p117 = scmp.ne.s32.totalorder %s109, %s112
      %p118 = scmp.eq.s32.totalorder %s33, 0
      %p119 = por %p117, %p118
      %p120 = scmp.ne.s32.totalorder %s109, %s112
      %p121 = scmp.eq.s32.totalorder %s38, 5
      %p122 = por %p120, %p121
      %p123 = scmp.ne.s32.totalorder %s112, %s113
      %p124 = scmp.eq.s32.totalorder %s38, 0
      %p125 = por %p123, %p124
      %p126 = scmp.ne.s32.totalorder %s112, %s113
      %p127 = scmp.eq.s32.totalorder %s39, 5
      %p128 = por %p126, %p127
      %p130 = scmp.ne.s32.totalorder %s113, %s129
      %p131 = scmp.eq.s32.totalorder %s39, 0
      %p132 = por %p130, %p131
      %s133 = ssub.s32 %s40, %s52
      %p134 = scmp.eq.s32.totalorder %s133, 0
      %s136 = sadd.s32 %s135, 1
      %s137 = scalar_select %p134, %s135, %s136
      %p140 = pneg %p134
      %p141 = scmp.eq.s32.totalorder %s33, 5
      %p142 = por %p140, %p141
      %p143 = scmp.ne.s32.totalorder %s135, %s138
      %p144 = scmp.eq.s32.totalorder %s33, 0
      %p145 = por %p143, %p144
      %p146 = scmp.ne.s32.totalorder %s135, %s138
      %p147 = scmp.eq.s32.totalorder %s38, 5
      %p148 = por %p146, %p147
      %p149 = scmp.ne.s32.totalorder %s138, %s139
      %p150 = scmp.eq.s32.totalorder %s38, 0
      %p151 = por %p149, %p150
      %p152 = scmp.ne.s32.totalorder %s138, %s139
      %p153 = scmp.eq.s32.totalorder %s39, 5
      %p154 = por %p152, %p153
      %p156 = scmp.ne.s32.totalorder %s139, %s155
      %p157 = scmp.eq.s32.totalorder %s39, 0
      %p158 = por %p156, %p157
      %s159 = ssub.s32 %s40, %s52
      %p160 = scmp.eq.s32.totalorder %s159, 0
      %s162 = sadd.s32 %s161, 1
      %s163 = scalar_select %p160, %s161, %s162
      %p166 = pneg %p160
      %p167 = scmp.eq.s32.totalorder %s33, 5
      %p168 = por %p166, %p167
      %p169 = scmp.ne.s32.totalorder %s161, %s164
      %p170 = scmp.eq.s32.totalorder %s33, 0
      %p171 = por %p169, %p170
      %p172 = scmp.ne.s32.totalorder %s161, %s164
      %p173 = scmp.eq.s32.totalorder %s38, 5
      %p174 = por %p172, %p173
      %p175 = scmp.ne.s32.totalorder %s164, %s165
      %p176 = scmp.eq.s32.totalorder %s38, 0
      %p177 = por %p175, %p176
      %p178 = scmp.ne.s32.totalorder %s164, %s165
      %p179 = scmp.eq.s32.totalorder %s39, 5
      %p180 = por %p178, %p179
      %p182 = scmp.ne.s32.totalorder %s165, %s181
      %p183 = scmp.eq.s32.totalorder %s39, 0
      %p184 = por %p182, %p183
      %s185 = ssub.s32 %s41, %s48
      %p186 = scmp.eq.s32.totalorder %s185, 0
      %s188 = sadd.s32 %s187, 1
      %s189 = scalar_select %p186, %s187, %s188
      %p192 = pneg %p186
      %p193 = scmp.eq.s32.totalorder %s33, 5
      %p194 = por %p192, %p193
      %p195 = scmp.ne.s32.totalorder %s187, %s190
      %p196 = scmp.eq.s32.totalorder %s33, 0
      %p197 = por %p195, %p196
      %p198 = scmp.ne.s32.totalorder %s187, %s190
      %p199 = scmp.eq.s32.totalorder %s38, 5
      %p200 = por %p198, %p199
      %p201 = scmp.ne.s32.totalorder %s190, %s191
      %p202 = scmp.eq.s32.totalorder %s38, 0
      %p203 = por %p201, %p202
      %p204 = scmp.ne.s32.totalorder %s190, %s191
      %p205 = scmp.eq.s32.totalorder %s39, 5
      %p206 = por %p204, %p205
      %p208 = scmp.ne.s32.totalorder %s191, %s207
      %p209 = scmp.eq.s32.totalorder %s39, 0
      %p210 = por %p208, %p209
      %p211 = scmp.le.s32.totalorder 1, %s33
      %p212 = scmp.lt.s32.totalorder %s33, 7
      %p213 = pnand %p211, %p212
      %p214 = pneg %p213
      // Predicated region
      $region9: #{tpu_custom_call.1} parent=5 // pred_check
        _
      $region10: #{tpu_custom_call.1} parent=5 // pred_check_branch
        %216 = sbr.rel (%p213) target = $region12
      $region11: #{tpu_custom_call.1} parent=5 // pred_region
        %s217 = ssub.s32 %s33, 1
      $region12: #{tpu_custom_call.1} parent=5 // pred_fallthru
        _
      %p218 = scmp.lt.s32.totalorder %s33, 6
      // Predicated region
      $region13: #{tpu_custom_call.1} parent=5 // pred_check
        %p219 = pneg %p218
      $region14: #{tpu_custom_call.1} parent=5 // pred_check_branch
        %221 = sbr.rel (%p219) target = $region16
      $region15: #{tpu_custom_call.1} parent=5 // pred_region
        // Predicated region
        $region17: #{tpu_custom_call.1} parent=15 // pred_check
          %p222 = pneg %p65
        $region18: #{tpu_custom_call.1} parent=15 // pred_check_branch
          %224 = sbr.rel (%p222) target = $region20
        $region19: #{tpu_custom_call.1} parent=15 // pred_region
          %s225 = sand.u32 %s55, 1
          %s226 = scalar_lea.sflag [#allocation7], %s225
          %s227 = sand.u32 %s55, 1
          %s228 = smul.addr %s227, 64
          %s229 = scalar_lea.vmem [#allocation6], %s228
          %s230 = smul.u32 4, %s41
          %232 = vsyncadd %s226, 0
          %s233 = smul.addr %s230, 2
          %s234 = smul.addr %s233, 8
          %s235 = scalar_lea.hbm %s1, %s234
          %s236 = sshll.u32 %s235, 4
          %s237 = int_to_ptr.hbm [resolvable:$true] %s236
          %s238 = sshll.u32 %s229, 4
          %s239 = int_to_ptr.vmem [resolvable:$true] %s238
          %244 = dma.hbm_to_vmem [thread:$0]  %s237, 1024, %s239, %s226, 256, 256, 16
        $region20: #{tpu_custom_call.1} parent=15 // pred_fallthru
          _
        // Predicated region
        $region21: #{tpu_custom_call.1} parent=15 // pred_check
          %p245 = pneg %p93
        $region22: #{tpu_custom_call.1} parent=15 // pred_check_branch
          %247 = sbr.rel (%p245) target = $region24
        $region23: #{tpu_custom_call.1} parent=15 // pred_region
          %s248 = sand.u32 %s33, 1
          %s249 = scalar_lea.sflag [#allocation10], %s248
          %s250 = sand.u32 %s83, 1
          %s251 = smul.addr %s250, 128
          %s252 = scalar_lea.vmem [#allocation9], %s251
          %s253 = smul.u32 16, %s41
          %255 = vsyncadd %s249, 0
          %s256 = smul.addr %s40, 32
          %s257 = sadd.s32 %s253, %s256
          %s258 = smul.addr %s257, 8
          %s259 = scalar_lea.hbm %s3, %s258
          %s260 = sshll.u32 %s259, 4
          %s261 = int_to_ptr.hbm [resolvable:$true] %s260
          %s262 = sshll.u32 %s252, 4
          %s263 = int_to_ptr.vmem [resolvable:$true] %s262
          %268 = dma.hbm_to_vmem [thread:$0]  %s261, 2048, %s263, %s249, 128, 128, 8
        $region24: #{tpu_custom_call.1} parent=15 // pred_fallthru
          _
        // Predicated region
        $region25: #{tpu_custom_call.1} parent=15 // pred_check
          %p269 = pneg %p119
        $region26: #{tpu_custom_call.1} parent=15 // pred_check_branch
          %271 = sbr.rel (%p269) target = $region28
        $region27: #{tpu_custom_call.1} parent=15 // pred_region
          %s272 = sand.u32 %s33, 1
          %s273 = scalar_lea.sflag [#allocation10], %s272
          %s274 = sand.u32 %s109, 1
          %s275 = smul.addr %s274, 64
          %s276 = scalar_lea.vmem [#allocation11], %s275
          %278 = vsyncadd %s273, 0
          %s279 = smul.addr %s40, 16
          %s280 = smul.addr %s279, 4
          %s281 = scalar_lea.hbm %s4, %s280
          %s282 = sshll.u32 %s281, 4
          %s283 = int_to_ptr.hbm [resolvable:$true] %s282
          %s284 = sshll.u32 %s276, 4
          %s285 = int_to_ptr.vmem [resolvable:$true] %s284
          %290 = dma.hbm_to_vmem [thread:$0]  %s283, 1024, %s285, %s273, 64, 64, 4
        $region28: #{tpu_custom_call.1} parent=15 // pred_fallthru
          _
        // Predicated region
        $region29: #{tpu_custom_call.1} parent=15 // pred_check
          %p291 = pneg %p145
        $region30: #{tpu_custom_call.1} parent=15 // pred_check_branch
          %293 = sbr.rel (%p291) target = $region32
        $region31: #{tpu_custom_call.1} parent=15 // pred_region
          %p294 = scmp.lt.s32.totalorder %s40, 2
          %s295 = scalar_select %p294, %s40, 2
          %s296 = scalar_lea.vmem %s5, %s295
        $region32: #{tpu_custom_call.1} parent=15 // pred_fallthru
          _
        // Predicated region
        $region33: #{tpu_custom_call.1} parent=15 // pred_check
          %p297 = pneg %p171
        $region34: #{tpu_custom_call.1} parent=15 // pred_check_branch
          %299 = sbr.rel (%p297) target = $region36
        $region35: #{tpu_custom_call.1} parent=15 // pred_region
          %s300 = sand.u32 %s161, 1
          %s301 = scalar_lea.sflag [#allocation13], %s300
          %s302 = sand.u32 %s161, 1
          %s303 = scalar_lea.vmem [#allocation12], %s302
          %305 = vsyncadd %s301, 0
          %s306 = scalar_lea.hbm %s6, %s40
          %s308 = sshll.u32 %s306, 4
          %s309 = int_to_ptr.hbm [resolvable:$true] %s308
          %s310 = sshll.u32 %s303, 4
          %s311 = int_to_ptr.vmem [resolvable:$true] %s310
          %313 = dma.hbm_to_vmem [thread:$0]  %s309, 16, %s311, %s301
        $region36: #{tpu_custom_call.1} parent=15 // pred_fallthru
          _
      $region16: #{tpu_custom_call.1} parent=5 // pred_fallthru
        _
      %p314 = scmp.le.s32.totalorder 1, %s33
      %p315 = scmp.lt.s32.totalorder %s33, 7
      %p316 = pnand %p314, %p315
      %p317 = pneg %p316
      // Predicated region
      $region37: #{tpu_custom_call.1} parent=5 // pred_check
        _
      $region38: #{tpu_custom_call.1} parent=5 // pred_check_branch
        %319 = sbr.rel (%p316) target = $region40
      $region39: #{tpu_custom_call.1} parent=5 // pred_region
        %s320 = ssub.s32 %s33, 1
        %s321 = sand.u32 %s58, 1
        %s322 = scalar_lea.sflag [#allocation7], %s321
        %s323 = sand.u32 %s58, 1
        %s324 = smul.addr %s323, 64
        %s325 = scalar_lea.vmem [#allocation6], %s324
        // Predicated region
        $region41: #{tpu_custom_call.1} parent=39 // pred_check
          %p326 = pneg %p71
        $region42: #{tpu_custom_call.1} parent=39 // pred_check_branch
          %328 = sbr.rel (%p326) target = $region44
        $region43: #{tpu_custom_call.1} parent=39 // pred_region
          %330 = dma.done %s322, 1024
        $region44: #{tpu_custom_call.1} parent=39 // pred_fallthru
          _
        %s331 = sand.u32 %s38, 1
        %s332 = scalar_lea.sflag [#allocation10], %s331
        %s333 = sand.u32 %s86, 1
        %s334 = smul.addr %s333, 128
        %s335 = scalar_lea.vmem [#allocation9], %s334
        // Predicated region
        $region45: #{tpu_custom_call.1} parent=39 // pred_check
          %p336 = pneg %p99
        $region46: #{tpu_custom_call.1} parent=39 // pred_check_branch
          %338 = sbr.rel (%p336) target = $region48
        $region47: #{tpu_custom_call.1} parent=39 // pred_region
          %340 = dma.done %s332, 2048
        $region48: #{tpu_custom_call.1} parent=39 // pred_fallthru
          _
        %s341 = sand.u32 %s38, 1
        %s342 = scalar_lea.sflag [#allocation10], %s341
        %s343 = sand.u32 %s112, 1
        %s344 = smul.addr %s343, 64
        %s345 = scalar_lea.vmem [#allocation11], %s344
        // Predicated region
        $region49: #{tpu_custom_call.1} parent=39 // pred_check
          %p346 = pneg %p125
        $region50: #{tpu_custom_call.1} parent=39 // pred_check_branch
          %348 = sbr.rel (%p346) target = $region52
        $region51: #{tpu_custom_call.1} parent=39 // pred_region
          %350 = dma.done %s342, 1024
        $region52: #{tpu_custom_call.1} parent=39 // pred_fallthru
          _
        %s351 = sand.u32 %s164, 1
        %s352 = scalar_lea.sflag [#allocation13], %s351
        %s353 = sand.u32 %s164, 1
        %s354 = scalar_lea.vmem [#allocation12], %s353
        // Predicated region
        $region53: #{tpu_custom_call.1} parent=39 // pred_check
          %p355 = pneg %p177
        $region54: #{tpu_custom_call.1} parent=39 // pred_check_branch
          %357 = sbr.rel (%p355) target = $region56
        $region55: #{tpu_custom_call.1} parent=39 // pred_region
          %359 = dma.done %s352, 16
        $region56: #{tpu_custom_call.1} parent=39 // pred_fallthru
          _
        %s360 = sand.u32 %s58, 1
        %s361 = scalar_lea.sflag [#allocation7], %s360
        %s362 = sand.u32 %s58, 1
        %s363 = smul.addr %s362, 64
        %s364 = scalar_lea.vmem [#allocation6], %s363
        %p365 = pneg %p71
        %p366 = pneg %p68
        %s367 = sand.u32 %s38, 1
        %s368 = scalar_lea.sflag [#allocation10], %s367
        %s369 = sand.u32 %s86, 1
        %s370 = smul.addr %s369, 128
        %s371 = scalar_lea.vmem [#allocation9], %s370
        %p372 = pneg %p99
        %p373 = pneg %p96
        %s374 = sand.u32 %s38, 1
        %s375 = scalar_lea.sflag [#allocation10], %s374
        %s376 = sand.u32 %s112, 1
        %s377 = smul.addr %s376, 64
        %s378 = scalar_lea.vmem [#allocation11], %s377
        %p379 = pneg %p125
        %p380 = pneg %p122
        %p381 = scmp.lt.s32.totalorder %s42, 2
        %s382 = scalar_select %p381, %s42, 2
        %s383 = scalar_lea.vmem %s5, %s382
        %p384 = pneg %p151
        %p385 = pneg %p148
        %s386 = sand.u32 %s164, 1
        %s387 = scalar_lea.sflag [#allocation13], %s386
        %s388 = sand.u32 %s164, 1
        %s389 = scalar_lea.vmem [#allocation12], %s388
        %p390 = pneg %p177
        %p391 = pneg %p174
        %p392 = pneg %p203
        %p393 = pneg %p200
        %s394 = sand.u32 %s190, 1
        %s395 = scalar_lea.sflag [#allocation8], %s394
        %s396 = sand.u32 %s190, 1
        %s397 = smul.addr %s396, 128
        %s398 = scalar_lea.vmem [#allocation14], %s397
        %s399 = smul.u32 4, %s43
        %s400 = smul.u32 16, %s43
        %p401 = scmp.lt.s32.totalorder %s42, 2
        %s402 = scalar_select %p401, %s42, 2
        %s403 = scalar_lea.vmem %s5, %s402
        %s404 = smul.u32 16, %s43
        %p405 = scmp.eq.s32.totalorder %s42, 0
        %p406 = scmp.eq.s32.totalorder %s43, 0
        %p407 = pnand %p405, %p406
        %p408 = pneg %p407
        // Predicated region
        $region57: #{tpu_custom_call.1} parent=39 // pred_check
          _
        $region58: #{tpu_custom_call.1} parent=39 // pred_check_branch
          %410 = sbr.rel (%p407) target = $region60
        $region59: #{tpu_custom_call.1} parent=39 // pred_region
          // Predicated region
          $region61: #{tpu_custom_call.1} parent=59 // pred_check
            _
          $region62: #{tpu_custom_call.1} parent=59 // pred_check_branch
            %412 = sbr.rel target = $region64
          $region63: #{tpu_custom_call.1} parent=59 // pred_region
            %413 = sst [smem:[#allocation17]] [#allocation16]
            %414 = sst [smem:[#allocation18]] [#allocation15]
          $region64: #{tpu_custom_call.1} parent=59 // pred_fallthru
            _
          %416 = shalt.err (0)
          %s418 = sshll.u32 %s2, 4
          %s419 = int_to_ptr.hbm [resolvable:$true] %s418
          %s420 = sshll.u32 [#allocation2], 4
          %s421 = int_to_ptr.vmem [resolvable:$true] %s420
          %423 = dma.hbm_to_vmem [thread:$0]  %s419, 2048, %s421, [#allocation3]
          %s424 = smul.u32 4, 32
          %s425 = smul.u32 %s424, 1
          %s426 = sshll.u32 %s425, 4
          %427 = dma.done [#allocation3], %s426
        $region60: #{tpu_custom_call.1} parent=39 // pred_fallthru
          _
        %p428 = scmp.lt.s32.totalorder %s42, 0
        %s429 = ssub.s32 0, %s42
        %s430 = scalar_select %p428, %s429, %s42
        %s431 = sand.u32 %s430, 1
        %s432 = ssub.s32 0, %s431
        %s433 = scalar_select %p428, %s432, %s431
        %p434 = scmp.ne.s32.totalorder %s433, 0
        %p435 = scmp.lt.s32.totalorder %s433, 0
        %p436 = pnand %p435, %p434
        %p437 = pneg %p436
        %s438 = sadd.s32 %s433, 2
        %s439 = scalar_select %p437, %s438, %s433
        %s440 = smul.u32 %s439, 256
        %s441 = sshra.s32 %s440, 3
        %s442 = sand.u32 %s440, 7
        %s443 = smul.addr %s441, 4
        %s444 = scalar_lea.vmem [#allocation2], %s443
        %v445 = vld [vmem:[%s444] sm:$0xf]
        %v446 = vld [vmem:[%s444 + $0x4] sm:$0xf]
        %v447 = vld [vmem:[%s444 + $0x8] sm:$0xf]
        %v448 = vld [vmem:[%s444 + $0xc] sm:$0xf]
        %v449 = vld [vmem:[%s444 + $0x10] sm:$0xf]
        %v450 = vld [vmem:[%s444 + $0x14] sm:$0xf]
        %v451 = vld [vmem:[%s444 + $0x18] sm:$0xf]
        %v452 = vld [vmem:[%s444 + $0x1c] sm:$0xf]
        %v453 = vld [vmem:[%s444 + $0x20] sm:$0xf]
        %v454 = vld [vmem:[%s444 + $0x24] sm:$0xf]
        %v455 = vld [vmem:[%s444 + $0x28] sm:$0xf]
        %v456 = vld [vmem:[%s444 + $0x2c] sm:$0xf]
        %v457 = vld [vmem:[%s444 + $0x30] sm:$0xf]
        %v458 = vld [vmem:[%s444 + $0x34] sm:$0xf]
        %v459 = vld [vmem:[%s444 + $0x38] sm:$0xf]
        %v460 = vld [vmem:[%s444 + $0x3c] sm:$0xf]
        %v461 = vld [vmem:[%s444 + $0x40] sm:$0xf]
        %v462 = vld [vmem:[%s444 + $0x44] sm:$0xf]
        %v463 = vld [vmem:[%s444 + $0x48] sm:$0xf]
        %v464 = vld [vmem:[%s444 + $0x4c] sm:$0xf]
        %v465 = vld [vmem:[%s444 + $0x50] sm:$0xf]
        %v466 = vld [vmem:[%s444 + $0x54] sm:$0xf]
        %v467 = vld [vmem:[%s444 + $0x58] sm:$0xf]
        %v468 = vld [vmem:[%s444 + $0x5c] sm:$0xf]
        %v469 = vld [vmem:[%s444 + $0x60] sm:$0xf]
        %v470 = vld [vmem:[%s444 + $0x64] sm:$0xf]
        %v471 = vld [vmem:[%s444 + $0x68] sm:$0xf]
        %v472 = vld [vmem:[%s444 + $0x6c] sm:$0xf]
        %v473 = vld [vmem:[%s444 + $0x70] sm:$0xf]
        %v474 = vld [vmem:[%s444 + $0x74] sm:$0xf]
        %v475 = vld [vmem:[%s444 + $0x78] sm:$0xf]
        %v476 = vld [vmem:[%s444 + $0x7c] sm:$0xf]
        %v477 = vld [vmem:[%s325] sm:$0xff]
        %v478 = vld [vmem:[%s325 + $0x8] sm:$0xff]
        %v479 = vld [vmem:[%s325 + $0x10] sm:$0xff]
        %v480 = vld [vmem:[%s325 + $0x18] sm:$0xff]
        %v481 = vld [vmem:[%s325 + $0x20] sm:$0xff]
        %v482 = vld [vmem:[%s325 + $0x28] sm:$0xff]
        %v483 = vld [vmem:[%s325 + $0x30] sm:$0xff]
        %v484 = vld [vmem:[%s325 + $0x38] sm:$0xff]
        %v485 = vunpack.c.0.s8 %v477
        %v486 = vunpack.c.0.s8 %v478
        %v487 = vunpack.c.1.s8 %v477
        %v488 = vunpack.c.1.s8 %v478
        %v489 = vunpack.c.2.s8 %v477
        %v490 = vunpack.c.2.s8 %v478
        %v491 = vunpack.c.3.s8 %v477
        %v492 = vunpack.c.3.s8 %v478
        %v493 = vunpack.c.0.s8 %v479
        %v494 = vunpack.c.0.s8 %v480
        %v495 = vunpack.c.1.s8 %v479
        %v496 = vunpack.c.1.s8 %v480
        %v497 = vunpack.c.2.s8 %v479
        %v498 = vunpack.c.2.s8 %v480
        %v499 = vunpack.c.3.s8 %v479
        %v500 = vunpack.c.3.s8 %v480
        %v501 = vunpack.c.0.s8 %v481
        %v502 = vunpack.c.0.s8 %v482
        %v503 = vunpack.c.1.s8 %v481
        %v504 = vunpack.c.1.s8 %v482
        %v505 = vunpack.c.2.s8 %v481
        %v506 = vunpack.c.2.s8 %v482
        %v507 = vunpack.c.3.s8 %v481
        %v508 = vunpack.c.3.s8 %v482
        %v509 = vunpack.c.0.s8 %v483
        %v510 = vunpack.c.0.s8 %v484
        %v511 = vunpack.c.1.s8 %v483
        %v512 = vunpack.c.1.s8 %v484
        %v513 = vunpack.c.2.s8 %v483
        %v514 = vunpack.c.2.s8 %v484
        %v515 = vunpack.c.3.s8 %v483
        %v516 = vunpack.c.3.s8 %v484
        %v517 = vcvt.s32.f32 %v485
        %v518 = vcvt.s32.f32 %v486
        %v519 = vcvt.s32.f32 %v487
        %v520 = vcvt.s32.f32 %v488
        %v521 = vcvt.s32.f32 %v489
        %v522 = vcvt.s32.f32 %v490
        %v523 = vcvt.s32.f32 %v491
        %v524 = vcvt.s32.f32 %v492
        %v525 = vcvt.s32.f32 %v493
        %v526 = vcvt.s32.f32 %v494
        %v527 = vcvt.s32.f32 %v495
        %v528 = vcvt.s32.f32 %v496
        %v529 = vcvt.s32.f32 %v497
        %v530 = vcvt.s32.f32 %v498
        %v531 = vcvt.s32.f32 %v499
        %v532 = vcvt.s32.f32 %v500
        %v533 = vcvt.s32.f32 %v501
        %v534 = vcvt.s32.f32 %v502
        %v535 = vcvt.s32.f32 %v503
        %v536 = vcvt.s32.f32 %v504
        %v537 = vcvt.s32.f32 %v505
        %v538 = vcvt.s32.f32 %v506
        %v539 = vcvt.s32.f32 %v507
        %v540 = vcvt.s32.f32 %v508
        %v541 = vcvt.s32.f32 %v509
        %v542 = vcvt.s32.f32 %v510
        %v543 = vcvt.s32.f32 %v511
        %v544 = vcvt.s32.f32 %v512
        %v545 = vcvt.s32.f32 %v513
        %v546 = vcvt.s32.f32 %v514
        %v547 = vcvt.s32.f32 %v515
        %v548 = vcvt.s32.f32 %v516
        %v549 = vpack.c.bf16 %v519, %v517
        %v550 = vpack.c.bf16 %v520, %v518
        %v551 = vpack.c.bf16 %v523, %v521
        %v552 = vpack.c.bf16 %v524, %v522
        %v553 = vpack.c.bf16 %v527, %v525
        %v554 = vpack.c.bf16 %v528, %v526
        %v555 = vpack.c.bf16 %v531, %v529
        %v556 = vpack.c.bf16 %v532, %v530
        %v557 = vpack.c.bf16 %v535, %v533
        %v558 = vpack.c.bf16 %v536, %v534
        %v559 = vpack.c.bf16 %v539, %v537
        %v560 = vpack.c.bf16 %v540, %v538
        %v561 = vpack.c.bf16 %v543, %v541
        %v562 = vpack.c.bf16 %v544, %v542
        %v563 = vpack.c.bf16 %v547, %v545
        %v564 = vpack.c.bf16 %v548, %v546
        %v597 = vunpack.c.l.b16 %v445
        %v598 = vunpack.c.l.b16 %v446
        %v599 = vunpack.c.l.b16 %v447
        %v600 = vunpack.c.l.b16 %v448
        %v601 = vunpack.c.l.b16 %v449
        %v602 = vunpack.c.l.b16 %v450
        %v603 = vunpack.c.l.b16 %v451
        %v604 = vunpack.c.l.b16 %v452
        %v605 = vunpack.c.l.b16 %v453
        %v606 = vunpack.c.l.b16 %v454
        %v607 = vunpack.c.l.b16 %v455
        %v608 = vunpack.c.l.b16 %v456
        %v609 = vunpack.c.l.b16 %v457
        %v610 = vunpack.c.l.b16 %v458
        %v611 = vunpack.c.l.b16 %v459
        %v612 = vunpack.c.l.b16 %v460
        %v613 = vunpack.c.l.b16 %v461
        %v614 = vunpack.c.l.b16 %v462
        %v615 = vunpack.c.l.b16 %v463
        %v616 = vunpack.c.l.b16 %v464
        %v617 = vunpack.c.l.b16 %v465
        %v618 = vunpack.c.l.b16 %v466
        %v619 = vunpack.c.l.b16 %v467
        %v620 = vunpack.c.l.b16 %v468
        %v621 = vunpack.c.l.b16 %v469
        %v622 = vunpack.c.l.b16 %v470
        %v623 = vunpack.c.l.b16 %v471
        %v624 = vunpack.c.l.b16 %v472
        %v625 = vunpack.c.l.b16 %v473
        %v626 = vunpack.c.l.b16 %v474
        %v627 = vunpack.c.l.b16 %v475
        %v628 = vunpack.c.l.b16 %v476
        %v629 = vpack.c.b16 %v598, %v597
        %v630 = vpack.c.b16 %v600, %v599
        %v631 = vpack.c.b16 %v602, %v601
        %v632 = vpack.c.b16 %v604, %v603
        %v633 = vpack.c.b16 %v606, %v605
        %v634 = vpack.c.b16 %v608, %v607
        %v635 = vpack.c.b16 %v610, %v609
        %v636 = vpack.c.b16 %v612, %v611
        %v637 = vpack.c.b16 %v614, %v613
        %v638 = vpack.c.b16 %v616, %v615
        %v639 = vpack.c.b16 %v618, %v617
        %v640 = vpack.c.b16 %v620, %v619
        %v641 = vpack.c.b16 %v622, %v621
        %v642 = vpack.c.b16 %v624, %v623
        %v643 = vpack.c.b16 %v626, %v625
        %v644 = vpack.c.b16 %v628, %v627
        %661 = vmatpush.bf16.msra.mxu0 %v636
        %662 = vmatpush.bf16.msra.mxu0 %v635
        %663 = vmatpush.bf16.msra.mxu0 %v634
        %664 = vmatpush.bf16.msra.mxu0 %v633
        %665 = vmatpush.bf16.msra.mxu0 %v632
        %666 = vmatpush.bf16.msra.mxu0 %v631
        %667 = vmatpush.bf16.msra.mxu0 %v630
        %668 = vmatpush.bf16.msra.mxu0 %v629
        %669 = vmatmul.bf16.gmra.mxu0 %v549
        %v670 = vpop.f32.mrf.mxu0
        %v671 = vadd.f32 0.0, %v670
        %v672 = vpop.f32.mrf.mxu0
        %v673 = vadd.f32 0.0, %v672
        %674 = vmatmul.bf16.gmra.mxu0 %v551
        %v675 = vpop.f32.mrf.mxu0
        %v676 = vadd.f32 0.0, %v675
        %v677 = vpop.f32.mrf.mxu0
        %v678 = vadd.f32 0.0, %v677
        %679 = vmatmul.bf16.gmra.mxu0 %v553
        %v680 = vpop.f32.mrf.mxu0
        %v681 = vadd.f32 0.0, %v680
        %v682 = vpop.f32.mrf.mxu0
        %v683 = vadd.f32 0.0, %v682
        %684 = vmatmul.bf16.gmra.mxu0 %v555
        %v685 = vpop.f32.mrf.mxu0
        %v686 = vadd.f32 0.0, %v685
        %v687 = vpop.f32.mrf.mxu0
        %v688 = vadd.f32 0.0, %v687
        %689 = vmatmul.bf16.gmra.mxu0 %v557
        %v690 = vpop.f32.mrf.mxu0
        %v691 = vadd.f32 0.0, %v690
        %v692 = vpop.f32.mrf.mxu0
        %v693 = vadd.f32 0.0, %v692
        %694 = vmatmul.bf16.gmra.mxu0 %v559
        %v695 = vpop.f32.mrf.mxu0
        %v696 = vadd.f32 0.0, %v695
        %v697 = vpop.f32.mrf.mxu0
        %v698 = vadd.f32 0.0, %v697
        %699 = vmatmul.bf16.gmra.mxu0 %v561
        %v700 = vpop.f32.mrf.mxu0
        %v701 = vadd.f32 0.0, %v700
        %v702 = vpop.f32.mrf.mxu0
        %v703 = vadd.f32 0.0, %v702
        %704 = vmatmul.bf16.gmra.mxu0 %v563
        %v705 = vpop.f32.mrf.mxu0
        %v706 = vadd.f32 0.0, %v705
        %v707 = vpop.f32.mrf.mxu0
        %v708 = vadd.f32 0.0, %v707
        %709 = vdwg.mxu0
        %710 = vmatpush.bf16.msra.mxu0 %v644
        %711 = vmatpush.bf16.msra.mxu0 %v643
        %712 = vmatpush.bf16.msra.mxu0 %v642
        %713 = vmatpush.bf16.msra.mxu0 %v641
        %714 = vmatpush.bf16.msra.mxu0 %v640
        %715 = vmatpush.bf16.msra.mxu0 %v639
        %716 = vmatpush.bf16.msra.mxu0 %v638
        %717 = vmatpush.bf16.msra.mxu0 %v637
        %718 = vmatmul.bf16.gmra.mxu0 %v550
        %v719 = vpop.f32.mrf.mxu0
        %v720 = vadd.f32 %v671, %v719
        %v721 = vpop.f32.mrf.mxu0
        %v722 = vadd.f32 %v673, %v721
        %723 = vmatmul.bf16.gmra.mxu0 %v552
        %v724 = vpop.f32.mrf.mxu0
        %v725 = vadd.f32 %v676, %v724
        %v726 = vpop.f32.mrf.mxu0
        %v727 = vadd.f32 %v678, %v726
        %728 = vmatmul.bf16.gmra.mxu0 %v554
        %v729 = vpop.f32.mrf.mxu0
        %v730 = vadd.f32 %v681, %v729
        %v731 = vpop.f32.mrf.mxu0
        %v732 = vadd.f32 %v683, %v731
        %733 = vmatmul.bf16.gmra.mxu0 %v556
        %v734 = vpop.f32.mrf.mxu0
        %v735 = vadd.f32 %v686, %v734
        %v736 = vpop.f32.mrf.mxu0
        %v737 = vadd.f32 %v688, %v736
        %738 = vmatmul.bf16.gmra.mxu0 %v558
        %v739 = vpop.f32.mrf.mxu0
        %v740 = vadd.f32 %v691, %v739
        %v741 = vpop.f32.mrf.mxu0
        %v742 = vadd.f32 %v693, %v741
        %743 = vmatmul.bf16.gmra.mxu0 %v560
        %v744 = vpop.f32.mrf.mxu0
        %v745 = vadd.f32 %v696, %v744
        %v746 = vpop.f32.mrf.mxu0
        %v747 = vadd.f32 %v698, %v746
        %748 = vmatmul.bf16.gmra.mxu0 %v562
        %v749 = vpop.f32.mrf.mxu0
        %v750 = vadd.f32 %v701, %v749
        %v751 = vpop.f32.mrf.mxu0
        %v752 = vadd.f32 %v703, %v751
        %753 = vmatmul.bf16.gmra.mxu0 %v564
        %v754 = vpop.f32.mrf.mxu0
        %v755 = vadd.f32 %v706, %v754
        %v756 = vpop.f32.mrf.mxu0
        %v757 = vadd.f32 %v708, %v756
        %758 = vdwg.mxu0
        %v759 = vpack.c.bf16 %v722, %v720
        %v760 = vpack.c.bf16 %v727, %v725
        %v761 = vpack.c.bf16 %v732, %v730
        %v762 = vpack.c.bf16 %v737, %v735
        %v763 = vpack.c.bf16 %v742, %v740
        %v764 = vpack.c.bf16 %v747, %v745
        %v765 = vpack.c.bf16 %v752, %v750
        %v766 = vpack.c.bf16 %v757, %v755
        %v767 = vld [vmem:[%s345] sm:$0xf]
        %v768 = vld [vmem:[%s345 + $0x4] sm:$0xf]
        %v769 = vld [vmem:[%s345 + $0x8] sm:$0xf]
        %v770 = vld [vmem:[%s345 + $0xc] sm:$0xf]
        %v771 = vld [vmem:[%s345 + $0x10] sm:$0xf]
        %v772 = vld [vmem:[%s345 + $0x14] sm:$0xf]
        %v773 = vld [vmem:[%s345 + $0x18] sm:$0xf]
        %v774 = vld [vmem:[%s345 + $0x1c] sm:$0xf]
        %v775 = vld [vmem:[%s345 + $0x20] sm:$0xf]
        %v776 = vld [vmem:[%s345 + $0x24] sm:$0xf]
        %v777 = vld [vmem:[%s345 + $0x28] sm:$0xf]
        %v778 = vld [vmem:[%s345 + $0x2c] sm:$0xf]
        %v779 = vld [vmem:[%s345 + $0x30] sm:$0xf]
        %v780 = vld [vmem:[%s345 + $0x34] sm:$0xf]
        %v781 = vld [vmem:[%s345 + $0x38] sm:$0xf]
        %v782 = vld [vmem:[%s345 + $0x3c] sm:$0xf]
        %v783 = vld [vmem:[%s335] sm:$0xff]
        %v784 = vld [vmem:[%s335 + $0x8] sm:$0xff]
        %v785 = vld [vmem:[%s335 + $0x10] sm:$0xff]
        %v786 = vld [vmem:[%s335 + $0x18] sm:$0xff]
        %v787 = vld [vmem:[%s335 + $0x20] sm:$0xff]
        %v788 = vld [vmem:[%s335 + $0x28] sm:$0xff]
        %v789 = vld [vmem:[%s335 + $0x30] sm:$0xff]
        %v790 = vld [vmem:[%s335 + $0x38] sm:$0xff]
        %v791 = vld [vmem:[%s335 + $0x40] sm:$0xff]
        %v792 = vld [vmem:[%s335 + $0x48] sm:$0xff]
        %v793 = vld [vmem:[%s335 + $0x50] sm:$0xff]
        %v794 = vld [vmem:[%s335 + $0x58] sm:$0xff]
        %v795 = vld [vmem:[%s335 + $0x60] sm:$0xff]
        %v796 = vld [vmem:[%s335 + $0x68] sm:$0xff]
        %v797 = vld [vmem:[%s335 + $0x70] sm:$0xff]
        %v798 = vld [vmem:[%s335 + $0x78] sm:$0xff]
        %v815 = vunpack.c.l.b16 %v767
        %v816 = vunpack.c.l.b16 %v768
        %v817 = vunpack.c.l.b16 %v769
        %v818 = vunpack.c.l.b16 %v770
        %v819 = vunpack.c.l.b16 %v771
        %v820 = vunpack.c.l.b16 %v772
        %v821 = vunpack.c.l.b16 %v773
        %v822 = vunpack.c.l.b16 %v774
        %v823 = vunpack.c.l.b16 %v775
        %v824 = vunpack.c.l.b16 %v776
        %v825 = vunpack.c.l.b16 %v777
        %v826 = vunpack.c.l.b16 %v778
        %v827 = vunpack.c.l.b16 %v779
        %v828 = vunpack.c.l.b16 %v780
        %v829 = vunpack.c.l.b16 %v781
        %v830 = vunpack.c.l.b16 %v782
        %v831 = vpack.c.b16 %v816, %v815
        %v832 = vpack.c.b16 %v818, %v817
        %v833 = vpack.c.b16 %v820, %v819
        %v834 = vpack.c.b16 %v822, %v821
        %v835 = vpack.c.b16 %v824, %v823
        %v836 = vpack.c.b16 %v826, %v825
        %v837 = vpack.c.b16 %v828, %v827
        %v838 = vpack.c.b16 %v830, %v829
        %847 = vmatpush.bf16.msra.mxu0 %v838
        %848 = vmatpush.bf16.msra.mxu0 %v837
        %849 = vmatpush.bf16.msra.mxu0 %v836
        %850 = vmatpush.bf16.msra.mxu0 %v835
        %851 = vmatpush.bf16.msra.mxu0 %v834
        %852 = vmatpush.bf16.msra.mxu0 %v833
        %853 = vmatpush.bf16.msra.mxu0 %v832
        %854 = vmatpush.bf16.msra.mxu0 %v831
        %855 = vmatmul.bf16.gmra.mxu0 %v759
        %v856 = vpop.f32.mrf.mxu0
        %v857 = vadd.f32 %v783, %v856
        %v858 = vpop.f32.mrf.mxu0
        %v859 = vadd.f32 %v784, %v858
        %860 = vmatmul.bf16.gmra.mxu0 %v760
        %v861 = vpop.f32.mrf.mxu0
        %v862 = vadd.f32 %v785, %v861
        %v863 = vpop.f32.mrf.mxu0
        %v864 = vadd.f32 %v786, %v863
        %865 = vmatmul.bf16.gmra.mxu0 %v761
        %v866 = vpop.f32.mrf.mxu0
        %v867 = vadd.f32 %v787, %v866
        %v868 = vpop.f32.mrf.mxu0
        %v869 = vadd.f32 %v788, %v868
        %870 = vmatmul.bf16.gmra.mxu0 %v762
        %v871 = vpop.f32.mrf.mxu0
        %v872 = vadd.f32 %v789, %v871
        %v873 = vpop.f32.mrf.mxu0
        %v874 = vadd.f32 %v790, %v873
        %875 = vmatmul.bf16.gmra.mxu0 %v763
        %v876 = vpop.f32.mrf.mxu0
        %v877 = vadd.f32 %v791, %v876
        %v878 = vpop.f32.mrf.mxu0
        %v879 = vadd.f32 %v792, %v878
        %880 = vmatmul.bf16.gmra.mxu0 %v764
        %v881 = vpop.f32.mrf.mxu0
        %v882 = vadd.f32 %v793, %v881
        %v883 = vpop.f32.mrf.mxu0
        %v884 = vadd.f32 %v794, %v883
        %885 = vmatmul.bf16.gmra.mxu0 %v765
        %v886 = vpop.f32.mrf.mxu0
        %v887 = vadd.f32 %v795, %v886
        %v888 = vpop.f32.mrf.mxu0
        %v889 = vadd.f32 %v796, %v888
        %890 = vmatmul.bf16.gmra.mxu0 %v766
        %v891 = vpop.f32.mrf.mxu0
        %v892 = vadd.f32 %v797, %v891
        %v893 = vpop.f32.mrf.mxu0
        %v894 = vadd.f32 %v798, %v893
        %895 = vdwg.mxu0
        %v896 = vmax.f32 %v857, 0.0
        %v897 = vmax.f32 %v859, 0.0
        %v898 = vmax.f32 %v862, 0.0
        %v899 = vmax.f32 %v864, 0.0
        %v900 = vmax.f32 %v867, 0.0
        %v901 = vmax.f32 %v869, 0.0
        %v902 = vmax.f32 %v872, 0.0
        %v903 = vmax.f32 %v874, 0.0
        %v904 = vmax.f32 %v877, 0.0
        %v905 = vmax.f32 %v879, 0.0
        %v906 = vmax.f32 %v882, 0.0
        %v907 = vmax.f32 %v884, 0.0
        %v908 = vmax.f32 %v887, 0.0
        %v909 = vmax.f32 %v889, 0.0
        %v910 = vmax.f32 %v892, 0.0
        %v911 = vmax.f32 %v894, 0.0
        %s912 = sld [smem:[#allocation5 + %s42]]
        %v913 = vlaneseq
        %v914 = vand.u32 %v913, 127
        %v915 = vstv %s912
        %vm916 = vcmp.lt.s32.totalorder %v914, %v915
        %s917 = scvt.s32.f32 %s912
        %v918 = vsel %vm916, 1, 0
        %vm919 = vcmp.eq.s32.totalorder %v918, 1
        %v920 = vsel %vm919, %v896, 0.0
        %v921 = vsel %vm919, %v897, 0.0
        %v922 = vsel %vm919, %v898, 0.0
        %v923 = vsel %vm919, %v899, 0.0
        %v924 = vsel %vm919, %v900, 0.0
        %v925 = vsel %vm919, %v901, 0.0
        %v926 = vsel %vm919, %v902, 0.0
        %v927 = vsel %vm919, %v903, 0.0
        %v928 = vsel %vm919, %v904, 0.0
        %v929 = vsel %vm919, %v905, 0.0
        %v930 = vsel %vm919, %v906, 0.0
        %v931 = vsel %vm919, %v907, 0.0
        %v932 = vsel %vm919, %v908, 0.0
        %v933 = vsel %vm919, %v909, 0.0
        %v934 = vsel %vm919, %v910, 0.0
        %v935 = vsel %vm919, %v911, 0.0
        %936 = vadd.xlane.f32.xlu0 %v920
        %v937 = vpop.xlane.xlu0 %936
        %938 = vadd.xlane.f32.xlu0 %v921
        %v939 = vpop.xlane.xlu0 %938
        %940 = vadd.xlane.f32.xlu0 %v922
        %v941 = vpop.xlane.xlu0 %940
        %942 = vadd.xlane.f32.xlu0 %v923
        %v943 = vpop.xlane.xlu0 %942
        %944 = vadd.xlane.f32.xlu0 %v924
        %v945 = vpop.xlane.xlu0 %944
        %946 = vadd.xlane.f32.xlu0 %v925
        %v947 = vpop.xlane.xlu0 %946
        %948 = vadd.xlane.f32.xlu0 %v926
        %v949 = vpop.xlane.xlu0 %948
        %950 = vadd.xlane.f32.xlu0 %v927
        %v951 = vpop.xlane.xlu0 %950
        %952 = vadd.xlane.f32.xlu0 %v928
        %v953 = vpop.xlane.xlu0 %952
        %954 = vadd.xlane.f32.xlu0 %v929
        %v955 = vpop.xlane.xlu0 %954
        %956 = vadd.xlane.f32.xlu0 %v930
        %v957 = vpop.xlane.xlu0 %956
        %958 = vadd.xlane.f32.xlu0 %v931
        %v959 = vpop.xlane.xlu0 %958
        %960 = vadd.xlane.f32.xlu0 %v932
        %v961 = vpop.xlane.xlu0 %960
        %962 = vadd.xlane.f32.xlu0 %v933
        %v963 = vpop.xlane.xlu0 %962
        %964 = vadd.xlane.f32.xlu0 %v934
        %v965 = vpop.xlane.xlu0 %964
        %966 = vadd.xlane.f32.xlu0 %v935
        %v967 = vpop.xlane.xlu0 %966
        %v968 = vstv %s917
        %v969 = vrcp.pop %v968
        %v970 = vmul.f32 %v968, %v969
        %v971 = vsub.f32 1.0, %v970
        %v972 = vmul.f32 %v969, %v971
        %v973 = vadd.f32 %v969, %v972
        %vm974 = vweird.f32 %v968
        %vm975 = vweird.f32 %v969
        %vm976 = vmor %vm974, %vm975
        %v977 = vsel %vm976, %v969, %v973
        %v978 = vand.u32 2147483647, %v968
        %vm979 = vcmp.eq.f32.partialorder %v978, 8.507059e+37
        %v980 = vand.u32 %v968, 2147483648
        %v981 = vor.u32 1.1754944e-38, %v980
        %v982 = vsel %vm979, %v981, %v977
        %v983 = vmul.f32 %v937, %v982
        %v984 = vmul.f32 %v939, %v982
        %v985 = vmul.f32 %v941, %v982
        %v986 = vmul.f32 %v943, %v982
        %v987 = vmul.f32 %v945, %v982
        %v988 = vmul.f32 %v947, %v982
        %v989 = vmul.f32 %v949, %v982
        %v990 = vmul.f32 %v951, %v982
        %v991 = vmul.f32 %v953, %v982
        %v992 = vmul.f32 %v955, %v982
        %v993 = vmul.f32 %v957, %v982
        %v994 = vmul.f32 %v959, %v982
        %v995 = vmul.f32 %v961, %v982
        %v996 = vmul.f32 %v963, %v982
        %v997 = vmul.f32 %v965, %v982
        %v998 = vmul.f32 %v967, %v982
        %v999 = vsub.f32 %v896, %v983
        %v1000 = vsub.f32 %v897, %v984
        %v1001 = vsub.f32 %v898, %v985
        %v1002 = vsub.f32 %v899, %v986
        %v1003 = vsub.f32 %v900, %v987
        %v1004 = vsub.f32 %v901, %v988
        %v1005 = vsub.f32 %v902, %v989
        %v1006 = vsub.f32 %v903, %v990
        %v1007 = vsub.f32 %v904, %v991
        %v1008 = vsub.f32 %v905, %v992
        %v1009 = vsub.f32 %v906, %v993
        %v1010 = vsub.f32 %v907, %v994
        %v1011 = vsub.f32 %v908, %v995
        %v1012 = vsub.f32 %v909, %v996
        %v1013 = vsub.f32 %v910, %v997
        %v1014 = vsub.f32 %v911, %v998
        %v1015 = vsel %vm919, %v999, 0.0
        %v1016 = vsel %vm919, %v1000, 0.0
        %v1017 = vsel %vm919, %v1001, 0.0
        %v1018 = vsel %vm919, %v1002, 0.0
        %v1019 = vsel %vm919, %v1003, 0.0
        %v1020 = vsel %vm919, %v1004, 0.0
        %v1021 = vsel %vm919, %v1005, 0.0
        %v1022 = vsel %vm919, %v1006, 0.0
        %v1023 = vsel %vm919, %v1007, 0.0
        %v1024 = vsel %vm919, %v1008, 0.0
        %v1025 = vsel %vm919, %v1009, 0.0
        %v1026 = vsel %vm919, %v1010, 0.0
        %v1027 = vsel %vm919, %v1011, 0.0
        %v1028 = vsel %vm919, %v1012, 0.0
        %v1029 = vsel %vm919, %v1013, 0.0
        %v1030 = vsel %vm919, %v1014, 0.0
        %v1031 = vmul.f32 %v1015, %v1015
        %v1032 = vmul.f32 %v1016, %v1016
        %v1033 = vmul.f32 %v1017, %v1017
        %v1034 = vmul.f32 %v1018, %v1018
        %v1035 = vmul.f32 %v1019, %v1019
        %v1036 = vmul.f32 %v1020, %v1020
        %v1037 = vmul.f32 %v1021, %v1021
        %v1038 = vmul.f32 %v1022, %v1022
        %v1039 = vmul.f32 %v1023, %v1023
        %v1040 = vmul.f32 %v1024, %v1024
        %v1041 = vmul.f32 %v1025, %v1025
        %v1042 = vmul.f32 %v1026, %v1026
        %v1043 = vmul.f32 %v1027, %v1027
        %v1044 = vmul.f32 %v1028, %v1028
        %v1045 = vmul.f32 %v1029, %v1029
        %v1046 = vmul.f32 %v1030, %v1030
        %1047 = vadd.xlane.f32.xlu0 %v1031
        %v1048 = vpop.xlane.xlu0 %1047
        %1049 = vadd.xlane.f32.xlu0 %v1032
        %v1050 = vpop.xlane.xlu0 %1049
        %1051 = vadd.xlane.f32.xlu0 %v1033
        %v1052 = vpop.xlane.xlu0 %1051
        %1053 = vadd.xlane.f32.xlu0 %v1034
        %v1054 = vpop.xlane.xlu0 %1053
        %1055 = vadd.xlane.f32.xlu0 %v1035
        %v1056 = vpop.xlane.xlu0 %1055
        %1057 = vadd.xlane.f32.xlu0 %v1036
        %v1058 = vpop.xlane.xlu0 %1057
        %1059 = vadd.xlane.f32.xlu0 %v1037
        %v1060 = vpop.xlane.xlu0 %1059
        %1061 = vadd.xlane.f32.xlu0 %v1038
        %v1062 = vpop.xlane.xlu0 %1061
        %1063 = vadd.xlane.f32.xlu0 %v1039
        %v1064 = vpop.xlane.xlu0 %1063
        %1065 = vadd.xlane.f32.xlu0 %v1040
        %v1066 = vpop.xlane.xlu0 %1065
        %1067 = vadd.xlane.f32.xlu0 %v1041
        %v1068 = vpop.xlane.xlu0 %1067
        %1069 = vadd.xlane.f32.xlu0 %v1042
        %v1070 = vpop.xlane.xlu0 %1069
        %1071 = vadd.xlane.f32.xlu0 %v1043
        %v1072 = vpop.xlane.xlu0 %1071
        %1073 = vadd.xlane.f32.xlu0 %v1044
        %v1074 = vpop.xlane.xlu0 %1073
        %1075 = vadd.xlane.f32.xlu0 %v1045
        %v1076 = vpop.xlane.xlu0 %1075
        %1077 = vadd.xlane.f32.xlu0 %v1046
        %v1078 = vpop.xlane.xlu0 %1077
        %v1079 = vmul.f32 %v1048, %v982
        %v1080 = vmul.f32 %v1050, %v982
        %v1081 = vmul.f32 %v1052, %v982
        %v1082 = vmul.f32 %v1054, %v982
        %v1083 = vmul.f32 %v1056, %v982
        %v1084 = vmul.f32 %v1058, %v982
        %v1085 = vmul.f32 %v1060, %v982
        %v1086 = vmul.f32 %v1062, %v982
        %v1087 = vmul.f32 %v1064, %v982
        %v1088 = vmul.f32 %v1066, %v982
        %v1089 = vmul.f32 %v1068, %v982
        %v1090 = vmul.f32 %v1070, %v982
        %v1091 = vmul.f32 %v1072, %v982
        %v1092 = vmul.f32 %v1074, %v982
        %v1093 = vmul.f32 %v1076, %v982
        %v1094 = vmul.f32 %v1078, %v982
        %v1095 = vadd.f32 %v1079, 1e-05
        %v1096 = vadd.f32 %v1080, 1e-05
        %v1097 = vadd.f32 %v1081, 1e-05
        %v1098 = vadd.f32 %v1082, 1e-05
        %v1099 = vadd.f32 %v1083, 1e-05
        %v1100 = vadd.f32 %v1084, 1e-05
        %v1101 = vadd.f32 %v1085, 1e-05
        %v1102 = vadd.f32 %v1086, 1e-05
        %v1103 = vadd.f32 %v1087, 1e-05
        %v1104 = vadd.f32 %v1088, 1e-05
        %v1105 = vadd.f32 %v1089, 1e-05
        %v1106 = vadd.f32 %v1090, 1e-05
        %v1107 = vadd.f32 %v1091, 1e-05
        %v1108 = vadd.f32 %v1092, 1e-05
        %v1109 = vadd.f32 %v1093, 1e-05
        %v1110 = vadd.f32 %v1094, 1e-05
        %v1111 = vrsqrt.pop %v1095
        %v1112 = vmul.f32 %v1111, %v1095
        %v1113 = vmul.f32 %v1112, %v1111
        %v1114 = vmul.f32 0.5, %v1113
        %v1115 = vsub.f32 1.5, %v1114
        %v1116 = vmul.f32 %v1111, %v1115
        %vm1117 = vweird.f32 %v1095
        %vm1118 = vweird.f32 %v1111
        %vm1119 = vmor %vm1117, %vm1118
        %v1120 = vsel %vm1119, %v1111, %v1116
        %v1121 = vrsqrt.pop %v1096
        %v1122 = vmul.f32 %v1121, %v1096
        %v1123 = vmul.f32 %v1122, %v1121
        %v1124 = vmul.f32 0.5, %v1123
        %v1125 = vsub.f32 1.5, %v1124
        %v1126 = vmul.f32 %v1121, %v1125
        %vm1127 = vweird.f32 %v1096
        %vm1128 = vweird.f32 %v1121
        %vm1129 = vmor %vm1127, %vm1128
        %v1130 = vsel %vm1129, %v1121, %v1126
        %v1131 = vrsqrt.pop %v1097
        %v1132 = vmul.f32 %v1131, %v1097
        %v1133 = vmul.f32 %v1132, %v1131
        %v1134 = vmul.f32 0.5, %v1133
        %v1135 = vsub.f32 1.5, %v1134
        %v1136 = vmul.f32 %v1131, %v1135
        %vm1137 = vweird.f32 %v1097
        %vm1138 = vweird.f32 %v1131
        %vm1139 = vmor %vm1137, %vm1138
        %v1140 = vsel %vm1139, %v1131, %v1136
        %v1141 = vrsqrt.pop %v1098
        %v1142 = vmul.f32 %v1141, %v1098
        %v1143 = vmul.f32 %v1142, %v1141
        %v1144 = vmul.f32 0.5, %v1143
        %v1145 = vsub.f32 1.5, %v1144
        %v1146 = vmul.f32 %v1141, %v1145
        %vm1147 = vweird.f32 %v1098
        %vm1148 = vweird.f32 %v1141
        %vm1149 = vmor %vm1147, %vm1148
        %v1150 = vsel %vm1149, %v1141, %v1146
        %v1151 = vrsqrt.pop %v1099
        %v1152 = vmul.f32 %v1151, %v1099
        %v1153 = vmul.f32 %v1152, %v1151
        %v1154 = vmul.f32 0.5, %v1153
        %v1155 = vsub.f32 1.5, %v1154
        %v1156 = vmul.f32 %v1151, %v1155
        %vm1157 = vweird.f32 %v1099
        %vm1158 = vweird.f32 %v1151
        %vm1159 = vmor %vm1157, %vm1158
        %v1160 = vsel %vm1159, %v1151, %v1156
        %v1161 = vrsqrt.pop %v1100
        %v1162 = vmul.f32 %v1161, %v1100
        %v1163 = vmul.f32 %v1162, %v1161
        %v1164 = vmul.f32 0.5, %v1163
        %v1165 = vsub.f32 1.5, %v1164
        %v1166 = vmul.f32 %v1161, %v1165
        %vm1167 = vweird.f32 %v1100
        %vm1168 = vweird.f32 %v1161
        %vm1169 = vmor %vm1167, %vm1168
        %v1170 = vsel %vm1169, %v1161, %v1166
        %v1171 = vrsqrt.pop %v1101
        %v1172 = vmul.f32 %v1171, %v1101
        %v1173 = vmul.f32 %v1172, %v1171
        %v1174 = vmul.f32 0.5, %v1173
        %v1175 = vsub.f32 1.5, %v1174
        %v1176 = vmul.f32 %v1171, %v1175
        %vm1177 = vweird.f32 %v1101
        %vm1178 = vweird.f32 %v1171
        %vm1179 = vmor %vm1177, %vm1178
        %v1180 = vsel %vm1179, %v1171, %v1176
        %v1181 = vrsqrt.pop %v1102
        %v1182 = vmul.f32 %v1181, %v1102
        %v1183 = vmul.f32 %v1182, %v1181
        %v1184 = vmul.f32 0.5, %v1183
        %v1185 = vsub.f32 1.5, %v1184
        %v1186 = vmul.f32 %v1181, %v1185
        %vm1187 = vweird.f32 %v1102
        %vm1188 = vweird.f32 %v1181
        %vm1189 = vmor %vm1187, %vm1188
        %v1190 = vsel %vm1189, %v1181, %v1186
        %v1191 = vrsqrt.pop %v1103
        %v1192 = vmul.f32 %v1191, %v1103
        %v1193 = vmul.f32 %v1192, %v1191
        %v1194 = vmul.f32 0.5, %v1193
        %v1195 = vsub.f32 1.5, %v1194
        %v1196 = vmul.f32 %v1191, %v1195
        %vm1197 = vweird.f32 %v1103
        %vm1198 = vweird.f32 %v1191
        %vm1199 = vmor %vm1197, %vm1198
        %v1200 = vsel %vm1199, %v1191, %v1196
        %v1201 = vrsqrt.pop %v1104
        %v1202 = vmul.f32 %v1201, %v1104
        %v1203 = vmul.f32 %v1202, %v1201
        %v1204 = vmul.f32 0.5, %v1203
        %v1205 = vsub.f32 1.5, %v1204
        %v1206 = vmul.f32 %v1201, %v1205
        %vm1207 = vweird.f32 %v1104
        %vm1208 = vweird.f32 %v1201
        %vm1209 = vmor %vm1207, %vm1208
        %v1210 = vsel %vm1209, %v1201, %v1206
        %v1211 = vrsqrt.pop %v1105
        %v1212 = vmul.f32 %v1211, %v1105
        %v1213 = vmul.f32 %v1212, %v1211
        %v1214 = vmul.f32 0.5, %v1213
        %v1215 = vsub.f32 1.5, %v1214
        %v1216 = vmul.f32 %v1211, %v1215
        %vm1217 = vweird.f32 %v1105
        %vm1218 = vweird.f32 %v1211
        %vm1219 = vmor %vm1217, %vm1218
        %v1220 = vsel %vm1219, %v1211, %v1216
        %v1221 = vrsqrt.pop %v1106
        %v1222 = vmul.f32 %v1221, %v1106
        %v1223 = vmul.f32 %v1222, %v1221
        %v1224 = vmul.f32 0.5, %v1223
        %v1225 = vsub.f32 1.5, %v1224
        %v1226 = vmul.f32 %v1221, %v1225
        %vm1227 = vweird.f32 %v1106
        %vm1228 = vweird.f32 %v1221
        %vm1229 = vmor %vm1227, %vm1228
        %v1230 = vsel %vm1229, %v1221, %v1226
        %v1231 = vrsqrt.pop %v1107
        %v1232 = vmul.f32 %v1231, %v1107
        %v1233 = vmul.f32 %v1232, %v1231
        %v1234 = vmul.f32 0.5, %v1233
        %v1235 = vsub.f32 1.5, %v1234
        %v1236 = vmul.f32 %v1231, %v1235
        %vm1237 = vweird.f32 %v1107
        %vm1238 = vweird.f32 %v1231
        %vm1239 = vmor %vm1237, %vm1238
        %v1240 = vsel %vm1239, %v1231, %v1236
        %v1241 = vrsqrt.pop %v1108
        %v1242 = vmul.f32 %v1241, %v1108
        %v1243 = vmul.f32 %v1242, %v1241
        %v1244 = vmul.f32 0.5, %v1243
        %v1245 = vsub.f32 1.5, %v1244
        %v1246 = vmul.f32 %v1241, %v1245
        %vm1247 = vweird.f32 %v1108
        %vm1248 = vweird.f32 %v1241
        %vm1249 = vmor %vm1247, %vm1248
        %v1250 = vsel %vm1249, %v1241, %v1246
        %v1251 = vrsqrt.pop %v1109
        %v1252 = vmul.f32 %v1251, %v1109
        %v1253 = vmul.f32 %v1252, %v1251
        %v1254 = vmul.f32 0.5, %v1253
        %v1255 = vsub.f32 1.5, %v1254
        %v1256 = vmul.f32 %v1251, %v1255
        %vm1257 = vweird.f32 %v1109
        %vm1258 = vweird.f32 %v1251
        %vm1259 = vmor %vm1257, %vm1258
        %v1260 = vsel %vm1259, %v1251, %v1256
        %v1261 = vrsqrt.pop %v1110
        %v1262 = vmul.f32 %v1261, %v1110
        %v1263 = vmul.f32 %v1262, %v1261
        %v1264 = vmul.f32 0.5, %v1263
        %v1265 = vsub.f32 1.5, %v1264
        %v1266 = vmul.f32 %v1261, %v1265
        %vm1267 = vweird.f32 %v1110
        %vm1268 = vweird.f32 %v1261
        %vm1269 = vmor %vm1267, %vm1268
        %v1270 = vsel %vm1269, %v1261, %v1266
        %v1271 = vmul.f32 %v1015, %v1120
        %v1272 = vmul.f32 %v1016, %v1130
        %v1273 = vmul.f32 %v1017, %v1140
        %v1274 = vmul.f32 %v1018, %v1150
        %v1275 = vmul.f32 %v1019, %v1160
        %v1276 = vmul.f32 %v1020, %v1170
        %v1277 = vmul.f32 %v1021, %v1180
        %v1278 = vmul.f32 %v1022, %v1190
        %v1279 = vmul.f32 %v1023, %v1200
        %v1280 = vmul.f32 %v1024, %v1210
        %v1281 = vmul.f32 %v1025, %v1220
        %v1282 = vmul.f32 %v1026, %v1230
        %v1283 = vmul.f32 %v1027, %v1240
        %v1284 = vmul.f32 %v1028, %v1250
        %v1285 = vmul.f32 %v1029, %v1260
        %v1286 = vmul.f32 %v1030, %v1270
        %v1287 = vld [vmem:[%s403] sm:$0x1]
        %v1289 = vperm.slane %v1287, 0
        %v1291 = vmul.f32 %v1271, %v1289
        %v1292 = vmul.f32 %v1272, %v1289
        %v1293 = vmul.f32 %v1273, %v1289
        %v1294 = vmul.f32 %v1274, %v1289
        %v1295 = vmul.f32 %v1275, %v1289
        %v1296 = vmul.f32 %v1276, %v1289
        %v1297 = vmul.f32 %v1277, %v1289
        %v1298 = vmul.f32 %v1278, %v1289
        %v1299 = vmul.f32 %v1279, %v1289
        %v1300 = vmul.f32 %v1280, %v1289
        %v1301 = vmul.f32 %v1281, %v1289
        %v1302 = vmul.f32 %v1282, %v1289
        %v1303 = vmul.f32 %v1283, %v1289
        %v1304 = vmul.f32 %v1284, %v1289
        %v1305 = vmul.f32 %v1285, %v1289
        %v1306 = vmul.f32 %v1286, %v1289
        %v1307 = vld [vmem:[%s354] sm:$0x1]
        %v1309 = vperm.slane %v1307, 0
        %v1311 = vadd.f32 %v1291, %v1309
        %v1312 = vadd.f32 %v1292, %v1309
        %v1313 = vadd.f32 %v1293, %v1309
        %v1314 = vadd.f32 %v1294, %v1309
        %v1315 = vadd.f32 %v1295, %v1309
        %v1316 = vadd.f32 %v1296, %v1309
        %v1317 = vadd.f32 %v1297, %v1309
        %v1318 = vadd.f32 %v1298, %v1309
        %v1319 = vadd.f32 %v1299, %v1309
        %v1320 = vadd.f32 %v1300, %v1309
        %v1321 = vadd.f32 %v1301, %v1309
        %v1322 = vadd.f32 %v1302, %v1309
        %v1323 = vadd.f32 %v1303, %v1309
        %v1324 = vadd.f32 %v1304, %v1309
        %v1325 = vadd.f32 %v1305, %v1309
        %v1326 = vadd.f32 %v1306, %v1309
        %v1327 = vmax.f32 %v1311, 0.0
        %v1328 = vmax.f32 %v1312, 0.0
        %v1329 = vmax.f32 %v1313, 0.0
        %v1330 = vmax.f32 %v1314, 0.0
        %v1331 = vmax.f32 %v1315, 0.0
        %v1332 = vmax.f32 %v1316, 0.0
        %v1333 = vmax.f32 %v1317, 0.0
        %v1334 = vmax.f32 %v1318, 0.0
        %v1335 = vmax.f32 %v1319, 0.0
        %v1336 = vmax.f32 %v1320, 0.0
        %v1337 = vmax.f32 %v1321, 0.0
        %v1338 = vmax.f32 %v1322, 0.0
        %v1339 = vmax.f32 %v1323, 0.0
        %v1340 = vmax.f32 %v1324, 0.0
        %v1341 = vmax.f32 %v1325, 0.0
        %v1342 = vmax.f32 %v1326, 0.0
        %s1343 = sadd.s32 %s42, 1
        %p1344 = scmp.lt.s32.totalorder %s1343, 0
        %s1345 = ssub.s32 0, %s1343
        %s1346 = scalar_select %p1344, %s1345, %s1343
        %s1347 = sand.u32 %s1346, 1
        %s1348 = ssub.s32 0, %s1347
        %s1349 = scalar_select %p1344, %s1348, %s1347
        %p1350 = scmp.ne.s32.totalorder %s1349, 0
        %p1351 = scmp.lt.s32.totalorder %s1349, 0
        %p1352 = pnand %p1351, %p1350
        %p1353 = pneg %p1352
        %s1354 = sadd.s32 %s1349, 2
        %s1355 = scalar_select %p1353, %s1354, %s1349
        %s1356 = smul.u32 %s1355, 256
        %s1357 = smul.u32 %s43, 128
        %s1358 = sadd.s32 %s1356, %s1357
        %v1359 = vpack.c.bf16 %v1327, %v1327
        %v1360 = vpack.c.bf16 %v1328, %v1328
        %v1361 = vpack.c.bf16 %v1329, %v1329
        %v1362 = vpack.c.bf16 %v1330, %v1330
        %v1363 = vpack.c.bf16 %v1331, %v1331
        %v1364 = vpack.c.bf16 %v1332, %v1332
        %v1365 = vpack.c.bf16 %v1333, %v1333
        %v1366 = vpack.c.bf16 %v1334, %v1334
        %v1367 = vpack.c.bf16 %v1335, %v1335
        %v1368 = vpack.c.bf16 %v1336, %v1336
        %v1369 = vpack.c.bf16 %v1337, %v1337
        %v1370 = vpack.c.bf16 %v1338, %v1338
        %v1371 = vpack.c.bf16 %v1339, %v1339
        %v1372 = vpack.c.bf16 %v1340, %v1340
        %v1373 = vpack.c.bf16 %v1341, %v1341
        %v1374 = vpack.c.bf16 %v1342, %v1342
        %s1375 = sshra.s32 %s1358, 3
        %s1376 = sand.u32 %s1358, 7
        %s1377 = smul.addr %s1375, 4
        %s1378 = scalar_lea.vmem [#allocation2], %s1377
        %1379 = vst [vmem:[%s1378] sm:$0xf] %v1359
        %1380 = vst [vmem:[%s1378 + $0x4] sm:$0xf] %v1360
        %1381 = vst [vmem:[%s1378 + $0x8] sm:$0xf] %v1361
        %1382 = vst [vmem:[%s1378 + $0xc] sm:$0xf] %v1362
        %1383 = vst [vmem:[%s1378 + $0x10] sm:$0xf] %v1363
        %1384 = vst [vmem:[%s1378 + $0x14] sm:$0xf] %v1364
        %1385 = vst [vmem:[%s1378 + $0x18] sm:$0xf] %v1365
        %1386 = vst [vmem:[%s1378 + $0x1c] sm:$0xf] %v1366
        %1387 = vst [vmem:[%s1378 + $0x20] sm:$0xf] %v1367
        %1388 = vst [vmem:[%s1378 + $0x24] sm:$0xf] %v1368
        %1389 = vst [vmem:[%s1378 + $0x28] sm:$0xf] %v1369
        %1390 = vst [vmem:[%s1378 + $0x2c] sm:$0xf] %v1370
        %1391 = vst [vmem:[%s1378 + $0x30] sm:$0xf] %v1371
        %1392 = vst [vmem:[%s1378 + $0x34] sm:$0xf] %v1372
        %1393 = vst [vmem:[%s1378 + $0x38] sm:$0xf] %v1373
        %1394 = vst [vmem:[%s1378 + $0x3c] sm:$0xf] %v1374
        %p1395 = scmp.eq.s32.totalorder %s42, 2
        // Predicated region
        $region65: #{tpu_custom_call.1} parent=39 // pred_check
          %p1396 = pneg %p1395
        $region66: #{tpu_custom_call.1} parent=39 // pred_check_branch
          %1398 = sbr.rel (%p1396) target = $region68
        $region67: #{tpu_custom_call.1} parent=39 // pred_region
          %1399 = vst [vmem:[%s398] sm:$0xff] %v1327
          %1400 = vst [vmem:[%s398 + $0x8] sm:$0xff] %v1328
          %1401 = vst [vmem:[%s398 + $0x10] sm:$0xff] %v1329
          %1402 = vst [vmem:[%s398 + $0x18] sm:$0xff] %v1330
          %1403 = vst [vmem:[%s398 + $0x20] sm:$0xff] %v1331
          %1404 = vst [vmem:[%s398 + $0x28] sm:$0xff] %v1332
          %1405 = vst [vmem:[%s398 + $0x30] sm:$0xff] %v1333
          %1406 = vst [vmem:[%s398 + $0x38] sm:$0xff] %v1334
          %1407 = vst [vmem:[%s398 + $0x40] sm:$0xff] %v1335
          %1408 = vst [vmem:[%s398 + $0x48] sm:$0xff] %v1336
          %1409 = vst [vmem:[%s398 + $0x50] sm:$0xff] %v1337
          %1410 = vst [vmem:[%s398 + $0x58] sm:$0xff] %v1338
          %1411 = vst [vmem:[%s398 + $0x60] sm:$0xff] %v1339
          %1412 = vst [vmem:[%s398 + $0x68] sm:$0xff] %v1340
          %1413 = vst [vmem:[%s398 + $0x70] sm:$0xff] %v1341
          %1414 = vst [vmem:[%s398 + $0x78] sm:$0xff] %v1342
        $region68: #{tpu_custom_call.1} parent=39 // pred_fallthru
          _
        %s1415 = sand.u32 %s190, 1
        %s1416 = scalar_lea.sflag [#allocation8], %s1415
        %s1417 = sand.u32 %s190, 1
        %s1418 = smul.addr %s1417, 128
        %s1419 = scalar_lea.vmem [#allocation14], %s1418
        // Predicated region
        $region69: #{tpu_custom_call.1} parent=39 // pred_check
          %p1420 = pneg %p200
        $region70: #{tpu_custom_call.1} parent=39 // pred_check_branch
          %1422 = sbr.rel (%p1420) target = $region72
        $region71: #{tpu_custom_call.1} parent=39 // pred_region
          %s1423 = smul.u32 16, %s43
          %1425 = vsyncadd %s1416, 0
          %s1426 = smul.addr %s1423, 8
          %s1427 = scalar_lea.hbm %s7, %s1426
          %s1428 = sshll.u32 %s1419, 4
          %s1429 = int_to_ptr.vmem [resolvable:$true] %s1428
          %s1430 = sshll.u32 %s1427, 4
          %s1431 = int_to_ptr.hbm [resolvable:$true] %s1430
          %1436 = dma.vmem_to_hbm [thread:$0]  %s1429, 2048, %s1431, %s1416, 128, 128, 8
        $region72: #{tpu_custom_call.1} parent=39 // pred_fallthru
          _
      $region40: #{tpu_custom_call.1} parent=5 // pred_fallthru
        _
      %p1437 = scmp.le.s32.totalorder 2, %s33
      // Predicated region
      $region73: #{tpu_custom_call.1} parent=5 // pred_check
        %p1438 = pneg %p1437
      $region74: #{tpu_custom_call.1} parent=5 // pred_check_branch
        %1440 = sbr.rel (%p1438) target = $region76
      $region75: #{tpu_custom_call.1} parent=5 // pred_region
        %s1441 = ssub.s32 %s33, 2
        // Predicated region
        $region77: #{tpu_custom_call.1} parent=75 // pred_check
          %p1442 = pneg %p206
        $region78: #{tpu_custom_call.1} parent=75 // pred_check_branch
          %1444 = sbr.rel (%p1442) target = $region80
        $region79: #{tpu_custom_call.1} parent=75 // pred_region
          %s1445 = sand.u32 %s191, 1
          %s1446 = scalar_lea.sflag [#allocation8], %s1445
          %s1447 = sand.u32 %s191, 1
          %s1448 = smul.addr %s1447, 128
          %s1449 = scalar_lea.vmem [#allocation14], %s1448
          %1451 = dma.done %s1446, 2048
        $region80: #{tpu_custom_call.1} parent=75 // pred_fallthru
          _
      $region76: #{tpu_custom_call.1} parent=5 // pred_fallthru
        _
    $region6: #{tpu_custom_call.1} parent=1 // loop_footer
      %s37 = sadd.s32 1, %s33
    $region7: #{tpu_custom_call.1} parent=1 // loop_footer_branch
      %32 = sbr.rel target = $region3
    $region8: #{tpu_custom_call.1} parent=1 // loop_exit
      _
    %1452 = vsyncpa [#allocation7], 1
    %s1453 = scalar_lea.sflag [#allocation7], 1
    %1454 = vsyncpa %s1453, 1
    %1455 = vsyncpa [#allocation10], 1
    %s1456 = scalar_lea.sflag [#allocation10], 1
    %1457 = vsyncpa %s1456, 1
    %1458 = vsyncpa [#allocation13], 1
    %s1459 = scalar_lea.sflag [#allocation13], 1
    %1460 = vsyncpa %s1459, 1
    %1461 = vsyncpa [#allocation8], 1
    %s1462 = scalar_lea.sflag [#allocation8], 1
    %1463 = vsyncpa %s1462, 1
  %1464 = vsyncmov [#allocation3]
  %s1465 = vpop.sfrf %1464
  %p1466 = scmp.eq.s32.totalorder %s1465, 0
  %p1467 = pneg %p1466
  %1469 = shalt.err (%p1467)

</llo_original>
